<compile_context>
chip_gen: v7x
topology: tpu7x:2x2x1
jax: 0.10.0
libtpu: 0.0.40
codegen_flags: <defaults>
</compile_context>

<pallas_src>
import functools

import jax
import jax.numpy as jnp
from jax.experimental import pallas as pl
from jax.experimental.pallas import tpu as pltpu


# ------------------------- model hyper-parameters --------------------------

K1, S1, C1 = 8, 4, 32     # conv layer 1: kernel, stride, out channels
K2, S2, C2 = 4, 2, 64     # conv layer 2
HIDDEN = 128              # encoder / feature dim
EPS = 1e-5

# TODO(synk): the wrapped SSL `model` (real wav2vec2: 7 conv layers + transformer
# encoder) is not specified in the module; this is a deterministic synthetic
# feature extractor with the same (waveform -> frame features) contract.


# ------------------------- fused Pallas kernel -----------------------------

def _gelu(x):
    # tanh-approx GELU (VPU + EUP friendly on all generations)
    c = 0.7978845608028654
    return 0.5 * x * (1.0 + jnp.tanh(c * (x + 0.044715 * x * x * x)))


def _w2v2_fused_kernel(p1_ref, w1_ref, b1_ref, w2lo_ref, w2hi_ref, b2_ref,
                       wp_ref, bp_ref, o_ref, *, f2, eps):
    """One batch element: pair-packed conv1 -> conv2 -> LayerNorm -> projection."""
    # ---- conv1 (pair-packed): (P_pad, 16)bf16 @ (16, 64)bf16 -> f32, GELU ----
    p1 = p1_ref[0]                                                    # (P_pad, 16) bf16
    h1 = jnp.dot(p1, w1_ref[...], preferred_element_type=jnp.float32) + b1_ref[...]
    h1 = _gelu(h1)                                                    # (P_pad, 64) f32
    # row p of h1 = [conv1_frame_{2p} (32ch), conv1_frame_{2p+1} (32ch)]

    # ---- conv2: frame g needs pairs g and g+1.  Split-weight matmuls + XLU roll
    #      (no sublane-misaligned slice, no 64->128 lane concat, no p2 slab). ----
    n = h1.shape[0]
    h1_next = pltpu.roll(h1, shift=n - 1, axis=0)        # == roll by -1: row p -> h1[p+1]
    a = h1.astype(jnp.bfloat16)
    b = h1_next.astype(jnp.bfloat16)
    h2 = (jnp.dot(a, w2lo_ref[...], preferred_element_type=jnp.float32)
          + jnp.dot(b, w2hi_ref[...], preferred_element_type=jnp.float32)
          + b2_ref[...])
    h2 = _gelu(h2)                                       # (P_pad, 64) f32; rows >= f2 are garbage

    # ---- LayerNorm (f32 stats), affine folded into projection weights ----
    mu = jnp.mean(h2, axis=-1, keepdims=True)
    xc = h2 - mu
    var = jnp.mean(xc * xc, axis=-1, keepdims=True)
    xn = (xc * jax.lax.rsqrt(var + eps)).astype(jnp.bfloat16)         # (P_pad, 64) bf16
    out = jnp.dot(xn, wp_ref[...], preferred_element_type=jnp.float32) + bp_ref[...]
    o_ref[0] = out[:f2].astype(o_ref.dtype)              # drop pad rows; lane-dense (F2, 128)


# ------------------------- param preparation (done ONCE, outside forward) ----

def prepare_params(p):
    """Precompute block-diag w1, paired b1, split w2, LN-folded projection."""
    w1p = jnp.zeros((2 * K1, 2 * C1), jnp.float32)
    w1p = w1p.at[:K1, :C1].set(p["w1"]).at[K1:, C1:].set(p["w1"])
    b1p = jnp.concatenate([p["b1"], p["b1"]]).reshape(1, 2 * C1)
    w2 = p["w2"]                                             # (K2*C1, C2) = (128, 64)
    wp_f = p["ln_g"][:, None] * p["wp"]                      # fold LN gamma
    bp_f = p["ln_b"] @ p["wp"] + p["bp"]                     # fold LN beta
    return {
        "w1p": w1p.astype(jnp.bfloat16),
        "b1p": b1p.astype(jnp.float32),
        "w2_lo": w2[: 2 * C1].astype(jnp.bfloat16),          # pair g weights
        "w2_hi": w2[2 * C1:].astype(jnp.bfloat16),           # pair g+1 weights
        "b2": p["b2"].reshape(1, C2).astype(jnp.float32),
        "wp_f": wp_f.astype(jnp.bfloat16),
        "bp_f": bp_f.reshape(1, HIDDEN).astype(jnp.float32),
    }


# ------------------------- wrapper ------------------------------------------

def w2v2_ta_forward(x, prepped):
    """W2V2_TA.forward: waveform (B, T) -> features (B, F2, HIDDEN)."""
    B, T = x.shape
    F1 = (T - K1) // S1 + 1
    F2 = (F1 - K2) // S2 + 1
    P = F2 + 1                              # conv1 frame-pairs actually needed
    P_pad = ((P + 7) // 8) * 8              # sublane-aligned pair count
    need = 8 * P_pad + 4                    # samples touched by the last (padded) pair row
    if need > T:
        x = jnp.pad(x, ((0, 0), (0, need - T)))

    # conv1 im2col, pair-packed, via static slices (no gather):
    #   row p = [x[8p:8p+8], x[8p+4:8p+12]]  == windows of conv1 frames 2p, 2p+1
    a = x[:, : 8 * P_pad].reshape(B, P_pad, K1)
    b = x[:, 4: 4 + 8 * P_pad].reshape(B, P_pad, K1)
    p1 = jnp.concatenate([a, b], axis=-1).astype(jnp.bfloat16)        # (B, P_pad, 16)

    kernel = functools.partial(_w2v2_fused_kernel, f2=F2, eps=EPS)
    feat = pl.pallas_call(
        kernel,
        out_shape=jax.ShapeDtypeStruct((B, F2, HIDDEN), jnp.float32),
        grid_spec=pltpu.PrefetchScalarGridSpec(
            num_scalar_prefetch=0,
            grid=(B,),
            in_specs=[
                pl.BlockSpec((1, P_pad, 2 * K1), lambda i: (i, 0, 0)),   # patches (per batch)
                pl.BlockSpec((2 * K1, 2 * C1), lambda i: (0, 0)),        # w1 (block-diag, bf16)
                pl.BlockSpec((1, 2 * C1), lambda i: (0, 0)),             # b1 (paired, f32)
                pl.BlockSpec((2 * C1, C2), lambda i: (0, 0)),            # w2_lo (bf16)
                pl.BlockSpec((2 * C1, C2), lambda i: (0, 0)),            # w2_hi (bf16)
                pl.BlockSpec((1, C2), lambda i: (0, 0)),                 # b2 (f32)
                pl.BlockSpec((C2, HIDDEN), lambda i: (0, 0)),            # wp' = g*wp (bf16)
                pl.BlockSpec((1, HIDDEN), lambda i: (0, 0)),             # bp' = be@wp + bp (f32)
            ],
            out_specs=pl.BlockSpec((1, F2, HIDDEN), lambda i: (i, 0, 0)),
        ),
        compiler_params=pltpu.CompilerParams(
            dimension_semantics=("parallel",)),    # B=2 -> both v7x TensorCores busy
    )(p1, prepped["w1p"], prepped["b1p"],
      prepped["w2_lo"], prepped["w2_hi"], prepped["b2"],
      prepped["wp_f"], prepped["bp_f"])
    return feat


# ------------------------- params & pure-JAX reference ----------------------

def init_params(key):
    ks = jax.random.split(key, 3)
    p = {}
    p["w1"] = jax.random.normal(ks[0], (K1 * 1, C1), jnp.float32) * (1.0 / jnp.sqrt(K1))
    p["b1"] = jnp.zeros((C1,), jnp.float32)
    p["w2"] = jax.random.normal(ks[1], (K2 * C1, C2), jnp.float32) * (1.0 / jnp.sqrt(K2 * C1))
    p["b2"] = jnp.zeros((C2,), jnp.float32)
    p["ln_g"] = jnp.ones((C2,), jnp.float32)
    p["ln_b"] = jnp.zeros((C2,), jnp.float32)
    p["wp"] = jax.random.normal(ks[2], (C2, HIDDEN), jnp.float32) * (1.0 / jnp.sqrt(C2))
    p["bp"] = jnp.zeros((HIDDEN,), jnp.float32)
    return p


def reference_forward(x, params):
    """Plain-JAX f32 reference (same math as the original unfused version)."""
    B, T = x.shape
    F1 = (T - K1) // S1 + 1
    idx1 = jnp.arange(F1)[:, None] * S1 + jnp.arange(K1)[None, :]
    h1 = _gelu(x[:, idx1].reshape(B * F1, K1) @ params["w1"] + params["b1"])
    h1 = h1.reshape(B, F1, C1)
    F2 = (F1 - K2) // S2 + 1
    idx2 = jnp.arange(F2)[:, None] * S2 + jnp.arange(K2)[None, :]
    h2 = _gelu(h1[:, idx2, :].reshape(B * F2, K2 * C1) @ params["w2"] + params["b2"])
    mu = h2.mean(-1, keepdims=True)
    xc = h2 - mu
    var = (xc * xc).mean(-1, keepdims=True)
    xn = xc * jax.lax.rsqrt(var + EPS) * params["ln_g"] + params["ln_b"]
    feat = xn @ params["wp"] + params["bp"]
    return feat.reshape(B, F2, HIDDEN)


# ------------------------- main ----------------------------------------------

if __name__ == "__main__":
    key = jax.random.PRNGKey(0)
    kx, kp = jax.random.split(key)

    B, T = 2, 1024                       # small raw-waveform input (B, T)
    x = jax.random.normal(kx, (B, T), jnp.float32)
    params = init_params(kp)
    prepped = prepare_params(params)     # built once, outside the jitted forward

    fwd = jax.jit(w2v2_ta_forward)
    feat = jax.block_until_ready(fwd(x, prepped))

    F1 = (T - K1) // S1 + 1
    F2 = (F1 - K2) // S2 + 1
    assert feat.shape == (B, F2, HIDDEN), feat.shape
    assert bool(jnp.all(jnp.isfinite(feat)))

    ref = reference_forward(x, params)
    # Tolerance covers bf16 MXU operands (f32 accumulation, f32 LN stats) vs f32 ref.
    assert bool(jnp.allclose(feat, ref, atol=3e-2, rtol=3e-2)), \
        float(jnp.max(jnp.abs(feat - ref)))

    print("KERNEL_OK")
</pallas_src>

<mosaic_0001>
module attributes {stable_mosaic.version = 11 : i64} {
  func.func @_w2v2_fused_kernel(%arg0: i32, %arg1: memref<1x128x16xbf16, #tpu.memory_space<vmem>>, %arg2: memref<16x64xbf16, #tpu.memory_space<vmem>>, %arg3: memref<1x64xf32, #tpu.memory_space<vmem>>, %arg4: memref<64x64xbf16, #tpu.memory_space<vmem>>, %arg5: memref<64x64xbf16, #tpu.memory_space<vmem>>, %arg6: memref<1x64xf32, #tpu.memory_space<vmem>>, %arg7: memref<64x128xbf16, #tpu.memory_space<vmem>>, %arg8: memref<1x128xf32, #tpu.memory_space<vmem>>, %arg9: memref<1x126x128xf32, #tpu.memory_space<vmem>>) attributes {dimension_semantics = [#tpu.dimension_semantics<parallel>], iteration_bounds = array<i64: 2>, scalar_prefetch = 0 : i64, scratch_operands = 0 : i64, tpu.core_type = #tpu.core_type<tc>, window_params = [{transform_indices = @transform_0, window_bounds = array<i64: 1, 128, 16>}, {pipeline_mode = #tpu.pipeline_mode<synchronous>, transform_indices = @transform_1, window_bounds = array<i64: 16, 64>}, {pipeline_mode = #tpu.pipeline_mode<synchronous>, transform_indices = @transform_2, window_bounds = array<i64: 1, 64>}, {pipeline_mode = #tpu.pipeline_mode<synchronous>, transform_indices = @transform_3, window_bounds = array<i64: 64, 64>}, {pipeline_mode = #tpu.pipeline_mode<synchronous>, transform_indices = @transform_4, window_bounds = array<i64: 64, 64>}, {pipeline_mode = #tpu.pipeline_mode<synchronous>, transform_indices = @transform_5, window_bounds = array<i64: 1, 64>}, {pipeline_mode = #tpu.pipeline_mode<synchronous>, transform_indices = @transform_6, window_bounds = array<i64: 64, 128>}, {pipeline_mode = #tpu.pipeline_mode<synchronous>, transform_indices = @transform_7, window_bounds = array<i64: 1, 128>}, {transform_indices = @transform_8, window_bounds = array<i64: 1, 126, 128>}]} {
    %c0 = arith.constant 0 : index
    %c0_0 = arith.constant 0 : index
    %c0_1 = arith.constant 0 : index
    %0 = vector.load %arg1[%c0, %c0_0, %c0_1] : memref<1x128x16xbf16, #tpu.memory_space<vmem>>, vector<1x128x16xbf16>
    %1 = vector.shape_cast %0 : vector<1x128x16xbf16> to vector<128x16xbf16>
    %c0_2 = arith.constant 0 : index
    %c0_3 = arith.constant 0 : index
    %2 = vector.load %arg2[%c0_2, %c0_3] : memref<16x64xbf16, #tpu.memory_space<vmem>>, vector<16x64xbf16>
    %cst = arith.constant dense<0.000000e+00> : vector<128x64xf32>
    %3 = tpu.matmul %1, %2, %cst {dimension_numbers = #tpu.dot_dimension_numbers<[1], [0], [0], [1], [0, 0, 1, 1], [], []>} : vector<128x16xbf16>, vector<16x64xbf16>, vector<128x64xf32> -> vector<128x64xf32>
    %c0_4 = arith.constant 0 : index
    %c0_5 = arith.constant 0 : index
    %4 = vector.load %arg3[%c0_4, %c0_5] : memref<1x64xf32, #tpu.memory_space<vmem>>, vector<1x64xf32>
    %5 = vector.broadcast %4 : vector<1x64xf32> to vector<128x64xf32>
    %6 = arith.addf %3, %5 : vector<128x64xf32>
    %cst_6 = arith.constant 5.000000e-01 : f32
    %7 = vector.broadcast %cst_6 : f32 to vector<128x64xf32>
    %8 = arith.mulf %7, %6 : vector<128x64xf32>
    %cst_7 = arith.constant 4.471500e-02 : f32
    %9 = vector.broadcast %cst_7 : f32 to vector<128x64xf32>
    %10 = arith.mulf %9, %6 : vector<128x64xf32>
    %11 = arith.mulf %10, %6 : vector<128x64xf32>
    %12 = arith.mulf %11, %6 : vector<128x64xf32>
    %13 = arith.addf %6, %12 : vector<128x64xf32>
    %cst_8 = arith.constant 0.797884583 : f32
    %14 = vector.broadcast %cst_8 : f32 to vector<128x64xf32>
    %15 = arith.mulf %14, %13 : vector<128x64xf32>
    %16 = math.tanh %15 : vector<128x64xf32>
    %cst_9 = arith.constant 1.000000e+00 : f32
    %17 = vector.broadcast %cst_9 : f32 to vector<128x64xf32>
    %18 = arith.addf %17, %16 : vector<128x64xf32>
    %19 = arith.mulf %8, %18 : vector<128x64xf32>
    %c127_i32 = arith.constant 127 : i32
    %20 = tpu.dynamic_rotate %19 by %c127_i32 dim 0 : vector<128x64xf32>, i32 -> vector<128x64xf32>
    %21 = arith.truncf %19 : vector<128x64xf32> to vector<128x64xbf16>
    %22 = arith.truncf %20 : vector<128x64xf32> to vector<128x64xbf16>
    %c0_10 = arith.constant 0 : index
    %c0_11 = arith.constant 0 : index
    %23 = vector.load %arg4[%c0_10, %c0_11] : memref<64x64xbf16, #tpu.memory_space<vmem>>, vector<64x64xbf16>
    %cst_12 = arith.constant dense<0.000000e+00> : vector<128x64xf32>
    %24 = tpu.matmul %21, %23, %cst_12 {dimension_numbers = #tpu.dot_dimension_numbers<[1], [0], [0], [1], [0, 0, 1, 1], [], []>} : vector<128x64xbf16>, vector<64x64xbf16>, vector<128x64xf32> -> vector<128x64xf32>
    %c0_13 = arith.constant 0 : index
    %c0_14 = arith.constant 0 : index
    %25 = vector.load %arg5[%c0_13, %c0_14] : memref<64x64xbf16, #tpu.memory_space<vmem>>, vector<64x64xbf16>
    %cst_15 = arith.constant dense<0.000000e+00> : vector<128x64xf32>
    %26 = tpu.matmul %22, %25, %cst_15 {dimension_numbers = #tpu.dot_dimension_numbers<[1], [0], [0], [1], [0, 0, 1, 1], [], []>} : vector<128x64xbf16>, vector<64x64xbf16>, vector<128x64xf32> -> vector<128x64xf32>
    %27 = arith.addf %24, %26 : vector<128x64xf32>
    %c0_16 = arith.constant 0 : index
    %c0_17 = arith.constant 0 : index
    %28 = vector.load %arg6[%c0_16, %c0_17] : memref<1x64xf32, #tpu.memory_space<vmem>>, vector<1x64xf32>
    %29 = vector.broadcast %28 : vector<1x64xf32> to vector<128x64xf32>
    %30 = arith.addf %27, %29 : vector<128x64xf32>
    %cst_18 = arith.constant 5.000000e-01 : f32
    %31 = vector.broadcast %cst_18 : f32 to vector<128x64xf32>
    %32 = arith.mulf %31, %30 : vector<128x64xf32>
    %cst_19 = arith.constant 4.471500e-02 : f32
    %33 = vector.broadcast %cst_19 : f32 to vector<128x64xf32>
    %34 = arith.mulf %33, %30 : vector<128x64xf32>
    %35 = arith.mulf %34, %30 : vector<128x64xf32>
    %36 = arith.mulf %35, %30 : vector<128x64xf32>
    %37 = arith.addf %30, %36 : vector<128x64xf32>
    %cst_20 = arith.constant 0.797884583 : f32
    %38 = vector.broadcast %cst_20 : f32 to vector<128x64xf32>
    %39 = arith.mulf %38, %37 : vector<128x64xf32>
    %40 = math.tanh %39 : vector<128x64xf32>
    %cst_21 = arith.constant 1.000000e+00 : f32
    %41 = vector.broadcast %cst_21 : f32 to vector<128x64xf32>
    %42 = arith.addf %41, %40 : vector<128x64xf32>
    %43 = arith.mulf %32, %42 : vector<128x64xf32>
    %cst_22 = arith.constant dense<0.000000e+00> : vector<128xf32>
    %44 = vector.multi_reduction <add>, %43, %cst_22 [1] : vector<128x64xf32> to vector<128xf32>
    %45 = vector.shape_cast %44 : vector<128xf32> to vector<128x1xf32>
    %cst_23 = arith.constant 6.400000e+01 : f32
    %46 = vector.broadcast %cst_23 : f32 to vector<128x1xf32>
    %47 = arith.divf %45, %46 : vector<128x1xf32>
    %48 = vector.broadcast %47 : vector<128x1xf32> to vector<128x64xf32>
    %49 = arith.subf %43, %48 : vector<128x64xf32>
    %50 = arith.mulf %49, %49 : vector<128x64xf32>
    %cst_24 = arith.constant dense<0.000000e+00> : vector<128xf32>
    %51 = vector.multi_reduction <add>, %50, %cst_24 [1] : vector<128x64xf32> to vector<128xf32>
    %52 = vector.shape_cast %51 : vector<128xf32> to vector<128x1xf32>
    %cst_25 = arith.constant 6.400000e+01 : f32
    %53 = vector.broadcast %cst_25 : f32 to vector<128x1xf32>
    %54 = arith.divf %52, %53 : vector<128x1xf32>
    %cst_26 = arith.constant 9.99999974E-6 : f32
    %55 = vector.broadcast %cst_26 : f32 to vector<128x1xf32>
    %56 = arith.addf %54, %55 : vector<128x1xf32>
    %57 = math.rsqrt %56 : vector<128x1xf32>
    %58 = vector.broadcast %57 : vector<128x1xf32> to vector<128x64xf32>
    %59 = arith.mulf %49, %58 : vector<128x64xf32>
    %60 = arith.truncf %59 : vector<128x64xf32> to vector<128x64xbf16>
    %c0_27 = arith.constant 0 : index
    %c0_28 = arith.constant 0 : index
    %61 = vector.load %arg7[%c0_27, %c0_28] : memref<64x128xbf16, #tpu.memory_space<vmem>>, vector<64x128xbf16>
    %cst_29 = arith.constant dense<0.000000e+00> : vector<128x128xf32>
    %62 = tpu.matmul %60, %61, %cst_29 {dimension_numbers = #tpu.dot_dimension_numbers<[1], [0], [0], [1], [0, 0, 1, 1], [], []>} : vector<128x64xbf16>, vector<64x128xbf16>, vector<128x128xf32> -> vector<128x128xf32>
    %c0_30 = arith.constant 0 : index
    %c0_31 = arith.constant 0 : index
    %63 = vector.load %arg8[%c0_30, %c0_31] : memref<1x128xf32, #tpu.memory_space<vmem>>, vector<1x128xf32>
    %64 = vector.broadcast %63 : vector<1x128xf32> to vector<128x128xf32>
    %65 = arith.addf %62, %64 : vector<128x128xf32>
    %66 = vector.extract_strided_slice %65 {offsets = [0, 0], sizes = [126, 128], strides = [1, 1]} : vector<128x128xf32> to vector<126x128xf32>
    %c0_32 = arith.constant 0 : index
    %c0_33 = arith.constant 0 : index
    %c0_34 = arith.constant 0 : index
    %67 = vector.load %arg9[%c0_32, %c0_33, %c0_34] : memref<1x126x128xf32, #tpu.memory_space<vmem>>, vector<1x126x128xf32>
    %68 = vector.shape_cast %67 : vector<1x126x128xf32> to vector<126x128xf32>
    %69 = vector.shape_cast %66 : vector<126x128xf32> to vector<1x126x128xf32>
    tpu.vector_store %arg9[%c0_32, %c0_33, %c0_34], %69 {strides = array<i32>} : memref<1x126x128xf32, #tpu.memory_space<vmem>>, vector<1x126x128xf32>,
    return
  }
  func.func @transform_0(%arg0: i32) -> (i32, i32, i32) {
    %c0_i32 = arith.constant 0 : i32
    %c0_i32_0 = arith.constant 0 : i32
    %c0_i32_1 = arith.constant 0 : i32
    return %arg0, %c0_i32, %c0_i32_0 : i32, i32, i32
  }
  func.func @transform_1(%arg0: i32) -> (i32, i32) {
    %c0_i32 = arith.constant 0 : i32
    %c0_i32_0 = arith.constant 0 : i32
    %c0_i32_1 = arith.constant 0 : i32
    return %c0_i32, %c0_i32_0 : i32, i32
  }
  func.func @transform_2(%arg0: i32) -> (i32, i32) {
    %c0_i32 = arith.constant 0 : i32
    %c0_i32_0 = arith.constant 0 : i32
    %c0_i32_1 = arith.constant 0 : i32
    return %c0_i32, %c0_i32_0 : i32, i32
  }
  func.func @transform_3(%arg0: i32) -> (i32, i32) {
    %c0_i32 = arith.constant 0 : i32
    %c0_i32_0 = arith.constant 0 : i32
    %c0_i32_1 = arith.constant 0 : i32
    return %c0_i32, %c0_i32_0 : i32, i32
  }
  func.func @transform_4(%arg0: i32) -> (i32, i32) {
    %c0_i32 = arith.constant 0 : i32
    %c0_i32_0 = arith.constant 0 : i32
    %c0_i32_1 = arith.constant 0 : i32
    return %c0_i32, %c0_i32_0 : i32, i32
  }
  func.func @transform_5(%arg0: i32) -> (i32, i32) {
    %c0_i32 = arith.constant 0 : i32
    %c0_i32_0 = arith.constant 0 : i32
    %c0_i32_1 = arith.constant 0 : i32
    return %c0_i32, %c0_i32_0 : i32, i32
  }
  func.func @transform_6(%arg0: i32) -> (i32, i32) {
    %c0_i32 = arith.constant 0 : i32
    %c0_i32_0 = arith.constant 0 : i32
    %c0_i32_1 = arith.constant 0 : i32
    return %c0_i32, %c0_i32_0 : i32, i32
  }
  func.func @transform_7(%arg0: i32) -> (i32, i32) {
    %c0_i32 = arith.constant 0 : i32
    %c0_i32_0 = arith.constant 0 : i32
    %c0_i32_1 = arith.constant 0 : i32
    return %c0_i32, %c0_i32_0 : i32, i32
  }
  func.func @transform_8(%arg0: i32) -> (i32, i32, i32) {
    %c0_i32 = arith.constant 0 : i32
    %c0_i32_0 = arith.constant 0 : i32
    %c0_i32_1 = arith.constant 0 : i32
    return %arg0, %c0_i32, %c0_i32_0 : i32, i32, i32
  }
}

</mosaic_0001>

<llo_original>
// kernel: w2v2_ta_forward.1
$region0: #{w2v2_ta_forward.1}
  #allocation0 [shape = 'u32[]', space=smem, size = 0x4, offset = 0x4, fixed_abs, tag = 'smem constant byte address 0x4 - core index']
  #allocation1 [shape = 'u32[144,128]{1,0:T(1,128)}', space=vmem, size = 0x12000, scoped, tag = 'internal scratch']
  %s0 = inlined_call_operand.vmem [shape: bf16[2,128,16], index: 0, kind: input, shape index: {}]
  %s1 = inlined_call_operand.vmem [shape: bf16[16,64], index: 1, kind: input, shape index: {}]
  %s2 = inlined_call_operand.vmem [shape: f32[1,64], index: 2, kind: input, shape index: {}]
  %s3 = inlined_call_operand.vmem [shape: bf16[64,64], index: 3, kind: input, shape index: {}]
  %s4 = inlined_call_operand.vmem [shape: bf16[64,64], index: 4, kind: input, shape index: {}]
  %s5 = inlined_call_operand.vmem [shape: f32[1,64], index: 5, kind: input, shape index: {}]
  %s6 = inlined_call_operand.vmem [shape: bf16[64,128], index: 6, kind: input, shape index: {}]
  %s7 = inlined_call_operand.vmem [shape: f32[1,128], index: 7, kind: input, shape index: {}]
  %s8 = inlined_call_operand.vmem [shape: f32[2,126,128], index: 8, kind: output, shape index: {}]
  %s9 = sld [smem:[#allocation0]]
  $region65: #{w2v2_ta_forward.1} parent=0
    _
  %s11 = ssub.s32 1, %s9
  %s12 = scalar_select 0, %s11, %s9
  loop: start=0, step=1, limit=4
  $region2: #{w2v2_ta_forward.1} parent=0 // loop_pre_header
    _
  $region3: #{w2v2_ta_forward.1} parent=0 // loop_header
    %s14 = sphi 0, %s18
    %p15 = scmp.ge.s32.totalorder %s14, 4
    %s24 = sphi 0, %s26
    %s27 = sphi 0, %s24
    %s28 = sphi 0, %s27
    %s44 = sphi 0, %s28
    %s48 = sphi 0, %s48
    %s50 = sphi 0, %s48
    %s51 = sphi 0, %s50
    %s65 = sphi 0, %s51
    %s69 = sphi 0, %s69
    %s71 = sphi 0, %s69
    %s72 = sphi 0, %s71
    %s86 = sphi 0, %s72
    %s90 = sphi 0, %s90
    %s92 = sphi 0, %s90
    %s93 = sphi 0, %s92
    %s107 = sphi 0, %s93
    %s111 = sphi 0, %s111
    %s113 = sphi 0, %s111
    %s114 = sphi 0, %s113
    %s128 = sphi 0, %s114
    %s132 = sphi 0, %s132
    %s134 = sphi 0, %s132
    %s135 = sphi 0, %s134
    %s149 = sphi 0, %s135
    %s153 = sphi 0, %s153
    %s155 = sphi 0, %s153
    %s156 = sphi 0, %s155
    %s170 = sphi 0, %s156
    %s174 = sphi 0, %s174
    %s176 = sphi 0, %s174
    %s177 = sphi 0, %s176
    %s191 = sphi 0, %s177
    %s197 = sphi 0, %s199
    %s200 = sphi 0, %s197
    %s201 = sphi 0, %s200
    %s217 = sphi 0, %s201
  $region4: #{w2v2_ta_forward.1} parent=0 // loop_header_branch
    %17 = sbr.rel (%p15) target = $region8
  $region5: #{w2v2_ta_forward.1} parent=0 // loop_body
    %s19 = ssub.s32 %s14, 1
    %s20 = ssub.s32 %s14, 2
    %s21 = sadd.s32 %s14, 1
    %s22 = ssub.s32 %s14, %s21
    %p23 = scmp.eq.s32.totalorder %s22, 0
    %s25 = sadd.s32 %s24, 1
    %s26 = scalar_select %p23, %s24, %s25
    %p29 = pneg %p23
    %p30 = scmp.eq.s32.totalorder %s14, 1
    %p31 = por %p29, %p30
    %p32 = scmp.ne.s32.totalorder %s24, %s27
    %p33 = scmp.eq.s32.totalorder %s14, 0
    %p34 = por %p32, %p33
    %p35 = scmp.ne.s32.totalorder %s24, %s27
    %p36 = scmp.eq.s32.totalorder %s19, 1
    %p37 = por %p35, %p36
    %p38 = scmp.ne.s32.totalorder %s27, %s28
    %p39 = scmp.eq.s32.totalorder %s19, 0
    %p40 = por %p38, %p39
    %p41 = scmp.ne.s32.totalorder %s27, %s28
    %p42 = scmp.eq.s32.totalorder %s20, 1
    %p43 = por %p41, %p42
    %p45 = scmp.ne.s32.totalorder %s28, %s44
    %p46 = scmp.eq.s32.totalorder %s20, 0
    %p47 = por %p45, %p46
    %s49 = sadd.s32 %s48, 1
    %p52 = scmp.eq.s32.totalorder %s14, 1
    %p53 = scmp.ne.s32.totalorder %s48, %s50
    %p54 = scmp.eq.s32.totalorder %s14, 0
    %p55 = por %p53, %p54
    %p56 = scmp.ne.s32.totalorder %s48, %s50
    %p57 = scmp.eq.s32.totalorder %s19, 1
    %p58 = por %p56, %p57
    %p59 = scmp.ne.s32.totalorder %s50, %s51
    %p60 = scmp.eq.s32.totalorder %s19, 0
    %p61 = por %p59, %p60
    %p62 = scmp.ne.s32.totalorder %s50, %s51
    %p63 = scmp.eq.s32.totalorder %s20, 1
    %p64 = por %p62, %p63
    %p66 = scmp.ne.s32.totalorder %s51, %s65
    %p67 = scmp.eq.s32.totalorder %s20, 0
    %p68 = por %p66, %p67
    %s70 = sadd.s32 %s69, 1
    %p73 = scmp.eq.s32.totalorder %s14, 1
    %p74 = scmp.ne.s32.totalorder %s69, %s71
    %p75 = scmp.eq.s32.totalorder %s14, 0
    %p76 = por %p74, %p75
    %p77 = scmp.ne.s32.totalorder %s69, %s71
    %p78 = scmp.eq.s32.totalorder %s19, 1
    %p79 = por %p77, %p78
    %p80 = scmp.ne.s32.totalorder %s71, %s72
    %p81 = scmp.eq.s32.totalorder %s19, 0
    %p82 = por %p80, %p81
    %p83 = scmp.ne.s32.totalorder %s71, %s72
    %p84 = scmp.eq.s32.totalorder %s20, 1
    %p85 = por %p83, %p84
    %p87 = scmp.ne.s32.totalorder %s72, %s86
    %p88 = scmp.eq.s32.totalorder %s20, 0
    %p89 = por %p87, %p88
    %s91 = sadd.s32 %s90, 1
    %p94 = scmp.eq.s32.totalorder %s14, 1
    %p95 = scmp.ne.s32.totalorder %s90, %s92
    %p96 = scmp.eq.s32.totalorder %s14, 0
    %p97 = por %p95, %p96
    %p98 = scmp.ne.s32.totalorder %s90, %s92
    %p99 = scmp.eq.s32.totalorder %s19, 1
    %p100 = por %p98, %p99
    %p101 = scmp.ne.s32.totalorder %s92, %s93
    %p102 = scmp.eq.s32.totalorder %s19, 0
    %p103 = por %p101, %p102
    %p104 = scmp.ne.s32.totalorder %s92, %s93
    %p105 = scmp.eq.s32.totalorder %s20, 1
    %p106 = por %p104, %p105
    %p108 = scmp.ne.s32.totalorder %s93, %s107
    %p109 = scmp.eq.s32.totalorder %s20, 0
    %p110 = por %p108, %p109
    %s112 = sadd.s32 %s111, 1
    %p115 = scmp.eq.s32.totalorder %s14, 1
    %p116 = scmp.ne.s32.totalorder %s111, %s113
    %p117 = scmp.eq.s32.totalorder %s14, 0
    %p118 = por %p116, %p117
    %p119 = scmp.ne.s32.totalorder %s111, %s113
    %p120 = scmp.eq.s32.totalorder %s19, 1
    %p121 = por %p119, %p120
    %p122 = scmp.ne.s32.totalorder %s113, %s114
    %p123 = scmp.eq.s32.totalorder %s19, 0
    %p124 = por %p122, %p123
    %p125 = scmp.ne.s32.totalorder %s113, %s114
    %p126 = scmp.eq.s32.totalorder %s20, 1
    %p127 = por %p125, %p126
    %p129 = scmp.ne.s32.totalorder %s114, %s128
    %p130 = scmp.eq.s32.totalorder %s20, 0
    %p131 = por %p129, %p130
    %s133 = sadd.s32 %s132, 1
    %p136 = scmp.eq.s32.totalorder %s14, 1
    %p137 = scmp.ne.s32.totalorder %s132, %s134
    %p138 = scmp.eq.s32.totalorder %s14, 0
    %p139 = por %p137, %p138
    %p140 = scmp.ne.s32.totalorder %s132, %s134
    %p141 = scmp.eq.s32.totalorder %s19, 1
    %p142 = por %p140, %p141
    %p143 = scmp.ne.s32.totalorder %s134, %s135
    %p144 = scmp.eq.s32.totalorder %s19, 0
    %p145 = por %p143, %p144
    %p146 = scmp.ne.s32.totalorder %s134, %s135
    %p147 = scmp.eq.s32.totalorder %s20, 1
    %p148 = por %p146, %p147
    %p150 = scmp.ne.s32.totalorder %s135, %s149
    %p151 = scmp.eq.s32.totalorder %s20, 0
    %p152 = por %p150, %p151
    %s154 = sadd.s32 %s153, 1
    %p157 = scmp.eq.s32.totalorder %s14, 1
    %p158 = scmp.ne.s32.totalorder %s153, %s155
    %p159 = scmp.eq.s32.totalorder %s14, 0
    %p160 = por %p158, %p159
    %p161 = scmp.ne.s32.totalorder %s153, %s155
    %p162 = scmp.eq.s32.totalorder %s19, 1
    %p163 = por %p161, %p162
    %p164 = scmp.ne.s32.totalorder %s155, %s156
    %p165 = scmp.eq.s32.totalorder %s19, 0
    %p166 = por %p164, %p165
    %p167 = scmp.ne.s32.totalorder %s155, %s156
    %p168 = scmp.eq.s32.totalorder %s20, 1
    %p169 = por %p167, %p168
    %p171 = scmp.ne.s32.totalorder %s156, %s170
    %p172 = scmp.eq.s32.totalorder %s20, 0
    %p173 = por %p171, %p172
    %s175 = sadd.s32 %s174, 1
    %p178 = scmp.eq.s32.totalorder %s14, 1
    %p179 = scmp.ne.s32.totalorder %s174, %s176
    %p180 = scmp.eq.s32.totalorder %s14, 0
    %p181 = por %p179, %p180
    %p182 = scmp.ne.s32.totalorder %s174, %s176
    %p183 = scmp.eq.s32.totalorder %s19, 1
    %p184 = por %p182, %p183
    %p185 = scmp.ne.s32.totalorder %s176, %s177
    %p186 = scmp.eq.s32.totalorder %s19, 0
    %p187 = por %p185, %p186
    %p188 = scmp.ne.s32.totalorder %s176, %s177
    %p189 = scmp.eq.s32.totalorder %s20, 1
    %p190 = por %p188, %p189
    %p192 = scmp.ne.s32.totalorder %s177, %s191
    %p193 = scmp.eq.s32.totalorder %s20, 0
    %p194 = por %p192, %p193
    %s195 = ssub.s32 %s14, %s21
    %p196 = scmp.eq.s32.totalorder %s195, 0
    %s198 = sadd.s32 %s197, 1
    %s199 = scalar_select %p196, %s197, %s198
    %p202 = pneg %p196
    %p203 = scmp.eq.s32.totalorder %s14, 1
    %p204 = por %p202, %p203
    %p205 = scmp.ne.s32.totalorder %s197, %s200
    %p206 = scmp.eq.s32.totalorder %s14, 0
    %p207 = por %p205, %p206
    %p208 = scmp.ne.s32.totalorder %s197, %s200
    %p209 = scmp.eq.s32.totalorder %s19, 1
    %p210 = por %p208, %p209
    %p211 = scmp.ne.s32.totalorder %s200, %s201
    %p212 = scmp.eq.s32.totalorder %s19, 0
    %p213 = por %p211, %p212
    %p214 = scmp.ne.s32.totalorder %s200, %s201
    %p215 = scmp.eq.s32.totalorder %s20, 1
    %p216 = por %p214, %p215
    %p218 = scmp.ne.s32.totalorder %s201, %s217
    %p219 = scmp.eq.s32.totalorder %s20, 0
    %p220 = por %p218, %p219
    %p221 = scmp.le.s32.totalorder 1, %s14
    %p222 = scmp.lt.s32.totalorder %s14, 3
    %p223 = pnand %p221, %p222
    %p224 = pneg %p223
    // Predicated region
    $region9: #{w2v2_ta_forward.1} parent=5 // pred_check
      _
    $region10: #{w2v2_ta_forward.1} parent=5 // pred_check_branch
      %226 = sbr.rel (%p223) target = $region12
    $region11: #{w2v2_ta_forward.1} parent=5 // pred_region
      %s227 = ssub.s32 %s14, 1
      // Predicated region
      $region13: #{w2v2_ta_forward.1} parent=11 // pred_check
        %p228 = pneg %p61
      $region14: #{w2v2_ta_forward.1} parent=11 // pred_check_branch
        %230 = sbr.rel (%p228) target = $region16
      $region15: #{w2v2_ta_forward.1} parent=11 // pred_region
        _
      $region16: #{w2v2_ta_forward.1} parent=11 // pred_fallthru
        _
      // Predicated region
      $region17: #{w2v2_ta_forward.1} parent=11 // pred_check
        %p231 = pneg %p82
      $region18: #{w2v2_ta_forward.1} parent=11 // pred_check_branch
        %233 = sbr.rel (%p231) target = $region20
      $region19: #{w2v2_ta_forward.1} parent=11 // pred_region
        _
      $region20: #{w2v2_ta_forward.1} parent=11 // pred_fallthru
        _
      // Predicated region
      $region21: #{w2v2_ta_forward.1} parent=11 // pred_check
        %p234 = pneg %p103
      $region22: #{w2v2_ta_forward.1} parent=11 // pred_check_branch
        %236 = sbr.rel (%p234) target = $region24
      $region23: #{w2v2_ta_forward.1} parent=11 // pred_region
        _
      $region24: #{w2v2_ta_forward.1} parent=11 // pred_fallthru
        _
      // Predicated region
      $region25: #{w2v2_ta_forward.1} parent=11 // pred_check
        %p237 = pneg %p124
      $region26: #{w2v2_ta_forward.1} parent=11 // pred_check_branch
        %239 = sbr.rel (%p237) target = $region28
      $region27: #{w2v2_ta_forward.1} parent=11 // pred_region
        _
      $region28: #{w2v2_ta_forward.1} parent=11 // pred_fallthru
        _
      // Predicated region
      $region29: #{w2v2_ta_forward.1} parent=11 // pred_check
        %p240 = pneg %p145
      $region30: #{w2v2_ta_forward.1} parent=11 // pred_check_branch
        %242 = sbr.rel (%p240) target = $region32
      $region31: #{w2v2_ta_forward.1} parent=11 // pred_region
        _
      $region32: #{w2v2_ta_forward.1} parent=11 // pred_fallthru
        _
      // Predicated region
      $region33: #{w2v2_ta_forward.1} parent=11 // pred_check
        %p243 = pneg %p166
      $region34: #{w2v2_ta_forward.1} parent=11 // pred_check_branch
        %245 = sbr.rel (%p243) target = $region36
      $region35: #{w2v2_ta_forward.1} parent=11 // pred_region
        _
      $region36: #{w2v2_ta_forward.1} parent=11 // pred_fallthru
        _
      // Predicated region
      $region37: #{w2v2_ta_forward.1} parent=11 // pred_check
        %p246 = pneg %p187
      $region38: #{w2v2_ta_forward.1} parent=11 // pred_check_branch
        %248 = sbr.rel (%p246) target = $region40
      $region39: #{w2v2_ta_forward.1} parent=11 // pred_region
        _
      $region40: #{w2v2_ta_forward.1} parent=11 // pred_fallthru
        _
    $region12: #{w2v2_ta_forward.1} parent=5 // pred_fallthru
      _
    %p249 = scmp.lt.s32.totalorder %s14, 2
    // Predicated region
    $region41: #{w2v2_ta_forward.1} parent=5 // pred_check
      %p250 = pneg %p249
    $region42: #{w2v2_ta_forward.1} parent=5 // pred_check_branch
      %252 = sbr.rel (%p250) target = $region44
    $region43: #{w2v2_ta_forward.1} parent=5 // pred_region
      // Predicated region
      $region45: #{w2v2_ta_forward.1} parent=43 // pred_check
        %p253 = pneg %p34
      $region46: #{w2v2_ta_forward.1} parent=43 // pred_check_branch
        %255 = sbr.rel (%p253) target = $region48
      $region47: #{w2v2_ta_forward.1} parent=43 // pred_region
        %p256 = scmp.lt.s32.totalorder %s14, 1
        %s257 = scalar_select %p256, %s14, 1
        %s258 = smul.addr %s257, 16
        %s259 = smul.addr %s258, 4
        %s260 = scalar_lea.vmem %s0, %s259
      $region48: #{w2v2_ta_forward.1} parent=43 // pred_fallthru
        _
    $region44: #{w2v2_ta_forward.1} parent=5 // pred_fallthru
      _
    %p261 = scmp.le.s32.totalorder 1, %s14
    %p262 = scmp.lt.s32.totalorder %s14, 3
    %p263 = pnand %p261, %p262
    %p264 = pneg %p263
    // Predicated region
    $region49: #{w2v2_ta_forward.1} parent=5 // pred_check
      _
    $region50: #{w2v2_ta_forward.1} parent=5 // pred_check_branch
      %266 = sbr.rel (%p263) target = $region52
    $region51: #{w2v2_ta_forward.1} parent=5 // pred_region
      %s267 = ssub.s32 %s14, 1
      %p268 = scmp.lt.s32.totalorder %s19, 1
      %s269 = scalar_select %p268, %s19, 1
      %s270 = smul.addr %s269, 16
      %s271 = smul.addr %s270, 4
      %s272 = scalar_lea.vmem %s0, %s271
      %p273 = pneg %p40
      %p274 = pneg %p37
      %p275 = pneg %p61
      %p276 = pneg %p58
      %p277 = pneg %p82
      %p278 = pneg %p79
      %p279 = pneg %p103
      %p280 = pneg %p100
      %p281 = pneg %p124
      %p282 = pneg %p121
      %p283 = pneg %p145
      %p284 = pneg %p142
      %p285 = pneg %p166
      %p286 = pneg %p163
      %p287 = pneg %p187
      %p288 = pneg %p184
      %p289 = pneg %p213
      %p290 = pneg %p210
      %p291 = scmp.lt.s32.totalorder %s19, 1
      %s292 = scalar_select %p291, %s19, 1
      %s293 = smul.addr %s292, 16
      %s294 = smul.addr %s293, 8
      %s295 = scalar_lea.vmem %s8, %s294
      %p296 = scmp.lt.s32.totalorder %s19, 1
      %s297 = scalar_select %p296, %s19, 1
      %s298 = smul.addr %s297, 16
      %s299 = smul.addr %s298, 4
      %s300 = scalar_lea.vmem %s0, %s299
      %p301 = scmp.lt.s32.totalorder %s19, 1
      %s302 = scalar_select %p301, %s19, 1
      %s303 = smul.addr %s302, 16
      %s304 = smul.addr %s303, 8
      %s305 = scalar_lea.vmem %s8, %s304
      %v307 = vld [vmem:[%s300] sm:$0xf]
      %v308 = vld [vmem:[%s300 + $0x4] sm:$0xf]
      %v309 = vld [vmem:[%s300 + $0x8] sm:$0xf]
      %v310 = vld [vmem:[%s300 + $0xc] sm:$0xf]
      %v311 = vld [vmem:[%s300 + $0x10] sm:$0xf]
      %v312 = vld [vmem:[%s300 + $0x14] sm:$0xf]
      %v313 = vld [vmem:[%s300 + $0x18] sm:$0xf]
      %v314 = vld [vmem:[%s300 + $0x1c] sm:$0xf]
      %v315 = vld [vmem:[%s300 + $0x20] sm:$0xf]
      %v316 = vld [vmem:[%s300 + $0x24] sm:$0xf]
      %v317 = vld [vmem:[%s300 + $0x28] sm:$0xf]
      %v318 = vld [vmem:[%s300 + $0x2c] sm:$0xf]
      %v319 = vld [vmem:[%s300 + $0x30] sm:$0xf]
      %v320 = vld [vmem:[%s300 + $0x34] sm:$0xf]
      %v321 = vld [vmem:[%s300 + $0x38] sm:$0xf]
      %v322 = vld [vmem:[%s300 + $0x3c] sm:$0xf]
      %v323 = vld [vmem:[%s1] sm:$0xf]
      %v324 = vld [vmem:[%s1 + $0x4] sm:$0xf]
      %v325 = vld [vmem:[%s2] sm:$0x1]
      %v327 = vlaneseq
      %v328 = vshrl.u32 %v327, 7
      %v329 = vsub.s32 0, %v328
      %v330 = vrot.slane %v325, %v329
      %v348 = vunpack.c.l.b16 %v307
      %v349 = vunpack.c.l.b16 %v308
      %v350 = vunpack.c.l.b16 %v309
      %v351 = vunpack.c.l.b16 %v310
      %v352 = vunpack.c.l.b16 %v311
      %v353 = vunpack.c.l.b16 %v312
      %v354 = vunpack.c.l.b16 %v313
      %v355 = vunpack.c.l.b16 %v314
      %v356 = vunpack.c.l.b16 %v315
      %v357 = vunpack.c.l.b16 %v316
      %v358 = vunpack.c.l.b16 %v317
      %v359 = vunpack.c.l.b16 %v318
      %v360 = vunpack.c.l.b16 %v319
      %v361 = vunpack.c.l.b16 %v320
      %v362 = vunpack.c.l.b16 %v321
      %v363 = vunpack.c.l.b16 %v322
      %v364 = vpack.c.b16 %v349, %v348
      %v365 = vpack.c.b16 %v351, %v350
      %v366 = vpack.c.b16 %v353, %v352
      %v367 = vpack.c.b16 %v355, %v354
      %v368 = vpack.c.b16 %v357, %v356
      %v369 = vpack.c.b16 %v359, %v358
      %v370 = vpack.c.b16 %v361, %v360
      %v371 = vpack.c.b16 %v363, %v362
      %v374 = vunpack.c.l.b16 %v323
      %v375 = vunpack.c.l.b16 %v324
      %v376 = vpack.c.b16 %v375, %v374
      %vm378 = vcmask 130048
      %v380 = vsel %vm378, %v364, 0
      %v383 = vsel %vm378, %v365, 0
      %v386 = vsel %vm378, %v366, 0
      %v389 = vsel %vm378, %v367, 0
      %v392 = vsel %vm378, %v368, 0
      %v395 = vsel %vm378, %v369, 0
      %v398 = vsel %vm378, %v370, 0
      %v401 = vsel %vm378, %v371, 0
      %403 = vmatprep.subr.bf16.mxu0 0
      %404 = vmatpush1.bf16.msra.mxu0 %v376
      %405 = vmatprep.subr.bf16.mxu0 0
      %406 = vmatpush1.bf16.msra.mxu0 0
      %407 = vmatprep.subr.bf16.mxu0 0
      %408 = vmatpush1.bf16.msra.mxu0 0
      %409 = vmatprep.subr.bf16.mxu0 0
      %410 = vmatpush1.bf16.msra.mxu0 0
      %411 = vmatprep.subr.bf16.mxu0 0
      %412 = vmatpush1.bf16.msra.mxu0 0
      %413 = vmatprep.subr.bf16.mxu0 0
      %414 = vmatpush1.bf16.msra.mxu0 0
      %415 = vmatprep.subr.bf16.mxu0 0
      %416 = vmatpush1.bf16.msra.mxu0 0
      %417 = vmatprep.subr.bf16.mxu0 0
      %418 = vmatpush1.bf16.msra.mxu0 0
      %419 = vmatprep.subr.bf16.mxu0 0
      %420 = vmatpush1.bf16.msra.mxu0 0
      %421 = vmatprep.subr.bf16.mxu0 0
      %422 = vmatpush1.bf16.msra.mxu0 0
      %423 = vmatprep.subr.bf16.mxu0 0
      %424 = vmatpush1.bf16.msra.mxu0 0
      %425 = vmatprep.subr.bf16.mxu0 0
      %426 = vmatpush1.bf16.msra.mxu0 0
      %427 = vmatprep.subr.bf16.mxu0 0
      %428 = vmatpush1.bf16.msra.mxu0 0
      %429 = vmatprep.subr.bf16.mxu0 0
      %430 = vmatpush1.bf16.msra.mxu0 0
      %431 = vmatprep.subr.bf16.mxu0 0
      %432 = vmatpush1.bf16.msra.mxu0 0
      %433 = vmatprep.subr.bf16.mxu0 0
      %434 = vmatpush1.bf16.msra.mxu0 0
      %435 = vmatprep.mubr.bf16.mxu0 0
      %436 = vmatmul.mubr.bf16.gmra.mrb[0].mxu0 %v380
      %v437 = vpop.f32.mrb[0].mxu0
      %v438 = vadd.f32 %v330, %v437
      %v439 = vpop.f32.mrb[0].mxu0
      %v440 = vpop.f32.mrb[0].mxu0
      %v441 = vadd.f32 %v330, %v440
      %v442 = vpop.f32.mrb[0].mxu0
      %443 = vmatprep.mubr.bf16.mxu0 0
      %444 = vmatmul.mubr.bf16.gmra.mrb[0].mxu0 %v383
      %v445 = vpop.f32.mrb[0].mxu0
      %v446 = vadd.f32 %v330, %v445
      %v447 = vpop.f32.mrb[0].mxu0
      %v448 = vpop.f32.mrb[0].mxu0
      %v449 = vadd.f32 %v330, %v448
      %v450 = vpop.f32.mrb[0].mxu0
      %451 = vmatprep.mubr.bf16.mxu0 0
      %452 = vmatmul.mubr.bf16.gmra.mrb[0].mxu0 %v386
      %v453 = vpop.f32.mrb[0].mxu0
      %v454 = vadd.f32 %v330, %v453
      %v455 = vpop.f32.mrb[0].mxu0
      %v456 = vpop.f32.mrb[0].mxu0
      %v457 = vadd.f32 %v330, %v456
      %v458 = vpop.f32.mrb[0].mxu0
      %459 = vmatprep.mubr.bf16.mxu0 0
      %460 = vmatmul.mubr.bf16.gmra.mrb[0].mxu0 %v389
      %v461 = vpop.f32.mrb[0].mxu0
      %v462 = vadd.f32 %v330, %v461
      %v463 = vpop.f32.mrb[0].mxu0
      %v464 = vpop.f32.mrb[0].mxu0
      %v465 = vadd.f32 %v330, %v464
      %v466 = vpop.f32.mrb[0].mxu0
      %467 = vmatprep.mubr.bf16.mxu0 0
      %468 = vmatmul.mubr.bf16.gmra.mrb[0].mxu0 %v392
      %v469 = vpop.f32.mrb[0].mxu0
      %v470 = vadd.f32 %v330, %v469
      %v471 = vpop.f32.mrb[0].mxu0
      %v472 = vpop.f32.mrb[0].mxu0
      %v473 = vadd.f32 %v330, %v472
      %v474 = vpop.f32.mrb[0].mxu0
      %475 = vmatprep.mubr.bf16.mxu0 0
      %476 = vmatmul.mubr.bf16.gmra.mrb[0].mxu0 %v395
      %v477 = vpop.f32.mrb[0].mxu0
      %v478 = vadd.f32 %v330, %v477
      %v479 = vpop.f32.mrb[0].mxu0
      %v480 = vpop.f32.mrb[0].mxu0
      %v481 = vadd.f32 %v330, %v480
      %v482 = vpop.f32.mrb[0].mxu0
      %483 = vmatprep.mubr.bf16.mxu0 0
      %484 = vmatmul.mubr.bf16.gmra.mrb[0].mxu0 %v398
      %v485 = vpop.f32.mrb[0].mxu0
      %v486 = vadd.f32 %v330, %v485
      %v487 = vpop.f32.mrb[0].mxu0
      %v488 = vpop.f32.mrb[0].mxu0
      %v489 = vadd.f32 %v330, %v488
      %v490 = vpop.f32.mrb[0].mxu0
      %491 = vmatprep.mubr.bf16.mxu0 0
      %492 = vmatmul.mubr.bf16.gmra.mrb[0].mxu0 %v401
      %v493 = vpop.f32.mrb[0].mxu0
      %v494 = vadd.f32 %v330, %v493
      %v495 = vpop.f32.mrb[0].mxu0
      %v496 = vpop.f32.mrb[0].mxu0
      %v497 = vadd.f32 %v330, %v496
      %v498 = vpop.f32.mrb[0].mxu0
      %499 = vdwg.mxu0
      %v500 = vmul.f32 %v438, 0.5
      %v501 = vmul.f32 %v441, 0.5
      %v502 = vmul.f32 %v446, 0.5
      %v503 = vmul.f32 %v449, 0.5
      %v504 = vmul.f32 %v454, 0.5
      %v505 = vmul.f32 %v457, 0.5
      %v506 = vmul.f32 %v462, 0.5
      %v507 = vmul.f32 %v465, 0.5
      %v508 = vmul.f32 %v470, 0.5
      %v509 = vmul.f32 %v473, 0.5
      %v510 = vmul.f32 %v478, 0.5
      %v511 = vmul.f32 %v481, 0.5
      %v512 = vmul.f32 %v486, 0.5
      %v513 = vmul.f32 %v489, 0.5
      %v514 = vmul.f32 %v494, 0.5
      %v515 = vmul.f32 %v497, 0.5
      %v516 = vmul.f32 %v438, 0.044715
      %v517 = vmul.f32 %v441, 0.044715
      %v518 = vmul.f32 %v446, 0.044715
      %v519 = vmul.f32 %v449, 0.044715
      %v520 = vmul.f32 %v454, 0.044715
      %v521 = vmul.f32 %v457, 0.044715
      %v522 = vmul.f32 %v462, 0.044715
      %v523 = vmul.f32 %v465, 0.044715
      %v524 = vmul.f32 %v470, 0.044715
      %v525 = vmul.f32 %v473, 0.044715
      %v526 = vmul.f32 %v478, 0.044715
      %v527 = vmul.f32 %v481, 0.044715
      %v528 = vmul.f32 %v486, 0.044715
      %v529 = vmul.f32 %v489, 0.044715
      %v530 = vmul.f32 %v494, 0.044715
      %v531 = vmul.f32 %v497, 0.044715
      %v532 = vmul.f32 %v516, %v438
      %v533 = vmul.f32 %v517, %v441
      %v534 = vmul.f32 %v518, %v446
      %v535 = vmul.f32 %v519, %v449
      %v536 = vmul.f32 %v520, %v454
      %v537 = vmul.f32 %v521, %v457
      %v538 = vmul.f32 %v522, %v462
      %v539 = vmul.f32 %v523, %v465
      %v540 = vmul.f32 %v524, %v470
      %v541 = vmul.f32 %v525, %v473
      %v542 = vmul.f32 %v526, %v478
      %v543 = vmul.f32 %v527, %v481
      %v544 = vmul.f32 %v528, %v486
      %v545 = vmul.f32 %v529, %v489
      %v546 = vmul.f32 %v530, %v494
      %v547 = vmul.f32 %v531, %v497
      %v548 = vmul.f32 %v532, %v438
      %v549 = vmul.f32 %v533, %v441
      %v550 = vmul.f32 %v534, %v446
      %v551 = vmul.f32 %v535, %v449
      %v552 = vmul.f32 %v536, %v454
      %v553 = vmul.f32 %v537, %v457
      %v554 = vmul.f32 %v538, %v462
      %v555 = vmul.f32 %v539, %v465
      %v556 = vmul.f32 %v540, %v470
      %v557 = vmul.f32 %v541, %v473
      %v558 = vmul.f32 %v542, %v478
      %v559 = vmul.f32 %v543, %v481
      %v560 = vmul.f32 %v544, %v486
      %v561 = vmul.f32 %v545, %v489
      %v562 = vmul.f32 %v546, %v494
      %v563 = vmul.f32 %v547, %v497
      %v564 = vadd.f32 %v438, %v548
      %v565 = vadd.f32 %v441, %v549
      %v566 = vadd.f32 %v446, %v550
      %v567 = vadd.f32 %v449, %v551
      %v568 = vadd.f32 %v454, %v552
      %v569 = vadd.f32 %v457, %v553
      %v570 = vadd.f32 %v462, %v554
      %v571 = vadd.f32 %v465, %v555
      %v572 = vadd.f32 %v470, %v556
      %v573 = vadd.f32 %v473, %v557
      %v574 = vadd.f32 %v478, %v558
      %v575 = vadd.f32 %v481, %v559
      %v576 = vadd.f32 %v486, %v560
      %v577 = vadd.f32 %v489, %v561
      %v578 = vadd.f32 %v494, %v562
      %v579 = vadd.f32 %v497, %v563
      %v580 = vmul.f32 %v564, 0.7978846
      %v581 = vmul.f32 %v565, 0.7978846
      %v582 = vmul.f32 %v566, 0.7978846
      %v583 = vmul.f32 %v567, 0.7978846
      %v584 = vmul.f32 %v568, 0.7978846
      %v585 = vmul.f32 %v569, 0.7978846
      %v586 = vmul.f32 %v570, 0.7978846
      %v587 = vmul.f32 %v571, 0.7978846
      %v588 = vmul.f32 %v572, 0.7978846
      %v589 = vmul.f32 %v573, 0.7978846
      %v590 = vmul.f32 %v574, 0.7978846
      %v591 = vmul.f32 %v575, 0.7978846
      %v592 = vmul.f32 %v576, 0.7978846
      %v593 = vmul.f32 %v577, 0.7978846
      %v594 = vmul.f32 %v578, 0.7978846
      %v595 = vmul.f32 %v579, 0.7978846
      %v596 = vtanh.pop %v580
      %v597 = vtanh.pop %v581
      %v598 = vtanh.pop %v582
      %v599 = vtanh.pop %v583
      %v600 = vtanh.pop %v584
      %v601 = vtanh.pop %v585
      %v602 = vtanh.pop %v586
      %v603 = vtanh.pop %v587
      %v604 = vtanh.pop %v588
      %v605 = vtanh.pop %v589
      %v606 = vtanh.pop %v590
      %v607 = vtanh.pop %v591
      %v608 = vtanh.pop %v592
      %v609 = vtanh.pop %v593
      %v610 = vtanh.pop %v594
      %v611 = vtanh.pop %v595
      %v612 = vadd.f32 %v596, 1.0
      %v613 = vadd.f32 %v597, 1.0
      %v614 = vadd.f32 %v598, 1.0
      %v615 = vadd.f32 %v599, 1.0
      %v616 = vadd.f32 %v600, 1.0
      %v617 = vadd.f32 %v601, 1.0
      %v618 = vadd.f32 %v602, 1.0
      %v619 = vadd.f32 %v603, 1.0
      %v620 = vadd.f32 %v604, 1.0
      %v621 = vadd.f32 %v605, 1.0
      %v622 = vadd.f32 %v606, 1.0
      %v623 = vadd.f32 %v607, 1.0
      %v624 = vadd.f32 %v608, 1.0
      %v625 = vadd.f32 %v609, 1.0
      %v626 = vadd.f32 %v610, 1.0
      %v627 = vadd.f32 %v611, 1.0
      %v628 = vmul.f32 %v500, %v612
      %v629 = vmul.f32 %v501, %v613
      %v630 = vmul.f32 %v502, %v614
      %v631 = vmul.f32 %v503, %v615
      %v632 = vmul.f32 %v504, %v616
      %v633 = vmul.f32 %v505, %v617
      %v634 = vmul.f32 %v506, %v618
      %v635 = vmul.f32 %v507, %v619
      %v636 = vmul.f32 %v508, %v620
      %v637 = vmul.f32 %v509, %v621
      %v638 = vmul.f32 %v510, %v622
      %v639 = vmul.f32 %v511, %v623
      %v640 = vmul.f32 %v512, %v624
      %v641 = vmul.f32 %v513, %v625
      %v642 = vmul.f32 %v514, %v626
      %v643 = vmul.f32 %v515, %v627
      %v644 = vrot.slane %v628, 1
      %v645 = vrot.slane %v629, 1
      %v646 = vrot.slane %v630, 1
      %v647 = vrot.slane %v631, 1
      %v648 = vrot.slane %v632, 1
      %v649 = vrot.slane %v633, 1
      %v650 = vrot.slane %v634, 1
      %v651 = vrot.slane %v635, 1
      %v652 = vrot.slane %v636, 1
      %v653 = vrot.slane %v637, 1
      %v654 = vrot.slane %v638, 1
      %v655 = vrot.slane %v639, 1
      %v656 = vrot.slane %v640, 1
      %v657 = vrot.slane %v641, 1
      %v658 = vrot.slane %v642, 1
      %v659 = vrot.slane %v643, 1
      %v660 = vlaneseq
      %v661 = vshrl.u32 %v660, 7
      %vm662 = vcmp.lt.s32.totalorder %v661, 7
      %v663 = vsel %vm662, %v658, %v659
      %v664 = vsel %vm662, %v657, %v658
      %v665 = vsel %vm662, %v656, %v657
      %v666 = vsel %vm662, %v655, %v656
      %v667 = vsel %vm662, %v654, %v655
      %v668 = vsel %vm662, %v653, %v654
      %v669 = vsel %vm662, %v652, %v653
      %v670 = vsel %vm662, %v651, %v652
      %v671 = vsel %vm662, %v650, %v651
      %v672 = vsel %vm662, %v649, %v650
      %v673 = vsel %vm662, %v648, %v649
      %v674 = vsel %vm662, %v647, %v648
      %v675 = vsel %vm662, %v646, %v647
      %v676 = vsel %vm662, %v645, %v646
      %v677 = vsel %vm662, %v644, %v645
      %v678 = vsel %vm662, %v659, %v644
      %v679 = vpack.c.bf16 %v629, %v628
      %v680 = vpack.c.bf16 %v631, %v630
      %v681 = vpack.c.bf16 %v633, %v632
      %v682 = vpack.c.bf16 %v635, %v634
      %v683 = vpack.c.bf16 %v637, %v636
      %v684 = vpack.c.bf16 %v639, %v638
      %v685 = vpack.c.bf16 %v641, %v640
      %v686 = vpack.c.bf16 %v643, %v642
      %v687 = vpack.c.bf16 %v676, %v677
      %v688 = vpack.c.bf16 %v674, %v675
      %v689 = vpack.c.bf16 %v672, %v673
      %v690 = vpack.c.bf16 %v670, %v671
      %v691 = vpack.c.bf16 %v668, %v669
      %v692 = vpack.c.bf16 %v666, %v667
      %v693 = vpack.c.bf16 %v664, %v665
      %v694 = vpack.c.bf16 %v678, %v663
      %v695 = vld [vmem:[%s3] sm:$0xf]
      %v696 = vld [vmem:[%s3 + $0x4] sm:$0xf]
      %v697 = vld [vmem:[%s3 + $0x8] sm:$0xf]
      %v698 = vld [vmem:[%s3 + $0xc] sm:$0xf]
      %v699 = vld [vmem:[%s3 + $0x10] sm:$0xf]
      %v700 = vld [vmem:[%s3 + $0x14] sm:$0xf]
      %v701 = vld [vmem:[%s3 + $0x18] sm:$0xf]
      %v702 = vld [vmem:[%s3 + $0x1c] sm:$0xf]
      %v703 = vld [vmem:[%s4] sm:$0xf]
      %v704 = vld [vmem:[%s4 + $0x4] sm:$0xf]
      %v705 = vld [vmem:[%s4 + $0x8] sm:$0xf]
      %v706 = vld [vmem:[%s4 + $0xc] sm:$0xf]
      %v707 = vld [vmem:[%s4 + $0x10] sm:$0xf]
      %v708 = vld [vmem:[%s4 + $0x14] sm:$0xf]
      %v709 = vld [vmem:[%s4 + $0x18] sm:$0xf]
      %v710 = vld [vmem:[%s4 + $0x1c] sm:$0xf]
      %v719 = vunpack.c.l.b16 %v703
      %v720 = vunpack.c.l.b16 %v704
      %v721 = vunpack.c.l.b16 %v705
      %v722 = vunpack.c.l.b16 %v706
      %v723 = vunpack.c.l.b16 %v707
      %v724 = vunpack.c.l.b16 %v708
      %v725 = vunpack.c.l.b16 %v709
      %v726 = vunpack.c.l.b16 %v710
      %v727 = vpack.c.b16 %v720, %v719
      %v728 = vpack.c.b16 %v722, %v721
      %v729 = vpack.c.b16 %v724, %v723
      %v730 = vpack.c.b16 %v726, %v725
      %vm735 = vcmask 523264
      %v737 = vsel %vm735, %v687, 0
      %v740 = vsel %vm735, %v688, 0
      %v743 = vsel %vm735, %v689, 0
      %v746 = vsel %vm735, %v690, 0
      %v749 = vsel %vm735, %v691, 0
      %v752 = vsel %vm735, %v692, 0
      %v755 = vsel %vm735, %v693, 0
      %v758 = vsel %vm735, %v694, 0
      %760 = vmatprep.subr.bf16.mxu0 0
      %761 = vmatpush1.bf16.msra.mxu0 %v727
      %762 = vmatprep.subr.bf16.mxu0 0
      %763 = vmatpush1.bf16.msra.mxu0 %v728
      %764 = vmatprep.subr.bf16.mxu0 0
      %765 = vmatpush1.bf16.msra.mxu0 %v729
      %766 = vmatprep.subr.bf16.mxu0 0
      %767 = vmatpush1.bf16.msra.mxu0 %v730
      %768 = vmatprep.subr.bf16.mxu0 0
      %769 = vmatpush1.bf16.msra.mxu0 0
      %770 = vmatprep.subr.bf16.mxu0 0
      %771 = vmatpush1.bf16.msra.mxu0 0
      %772 = vmatprep.subr.bf16.mxu0 0
      %773 = vmatpush1.bf16.msra.mxu0 0
      %774 = vmatprep.subr.bf16.mxu0 0
      %775 = vmatpush1.bf16.msra.mxu0 0
      %776 = vmatprep.subr.bf16.mxu0 0
      %777 = vmatpush1.bf16.msra.mxu0 0
      %778 = vmatprep.subr.bf16.mxu0 0
      %779 = vmatpush1.bf16.msra.mxu0 0
      %780 = vmatprep.subr.bf16.mxu0 0
      %781 = vmatpush1.bf16.msra.mxu0 0
      %782 = vmatprep.subr.bf16.mxu0 0
      %783 = vmatpush1.bf16.msra.mxu0 0
      %784 = vmatprep.subr.bf16.mxu0 0
      %785 = vmatpush1.bf16.msra.mxu0 0
      %786 = vmatprep.subr.bf16.mxu0 0
      %787 = vmatpush1.bf16.msra.mxu0 0
      %788 = vmatprep.subr.bf16.mxu0 0
      %789 = vmatpush1.bf16.msra.mxu0 0
      %790 = vmatprep.subr.bf16.mxu0 0
      %791 = vmatpush1.bf16.msra.mxu0 0
      %792 = vmatprep.mubr.bf16.mxu0 0
      %793 = vmatmul.mubr.bf16.gmra.mrb[0].mxu0 %v737
      %v794 = vpop.f32.mrb[0].mxu0
      %v795 = vadd.f32 0.0, %v794
      %v796 = vpop.f32.mrb[0].mxu0
      %v797 = vpop.f32.mrb[0].mxu0
      %v798 = vadd.f32 0.0, %v797
      %v799 = vpop.f32.mrb[0].mxu0
      %800 = vmatprep.mubr.bf16.mxu0 0
      %801 = vmatmul.mubr.bf16.gmra.mrb[0].mxu0 %v740
      %v802 = vpop.f32.mrb[0].mxu0
      %v803 = vadd.f32 0.0, %v802
      %v804 = vpop.f32.mrb[0].mxu0
      %v805 = vpop.f32.mrb[0].mxu0
      %v806 = vadd.f32 0.0, %v805
      %v807 = vpop.f32.mrb[0].mxu0
      %808 = vmatprep.mubr.bf16.mxu0 0
      %809 = vmatmul.mubr.bf16.gmra.mrb[0].mxu0 %v743
      %v810 = vpop.f32.mrb[0].mxu0
      %v811 = vadd.f32 0.0, %v810
      %v812 = vpop.f32.mrb[0].mxu0
      %v813 = vpop.f32.mrb[0].mxu0
      %v814 = vadd.f32 0.0, %v813
      %v815 = vpop.f32.mrb[0].mxu0
      %816 = vmatprep.mubr.bf16.mxu0 0
      %817 = vmatmul.mubr.bf16.gmra.mrb[0].mxu0 %v746
      %v818 = vpop.f32.mrb[0].mxu0
      %v819 = vadd.f32 0.0, %v818
      %v820 = vpop.f32.mrb[0].mxu0
      %v821 = vpop.f32.mrb[0].mxu0
      %v822 = vadd.f32 0.0, %v821
      %v823 = vpop.f32.mrb[0].mxu0
      %824 = vmatprep.mubr.bf16.mxu0 0
      %825 = vmatmul.mubr.bf16.gmra.mrb[0].mxu0 %v749
      %v826 = vpop.f32.mrb[0].mxu0
      %v827 = vadd.f32 0.0, %v826
      %v828 = vpop.f32.mrb[0].mxu0
      %v829 = vpop.f32.mrb[0].mxu0
      %v830 = vadd.f32 0.0, %v829
      %v831 = vpop.f32.mrb[0].mxu0
      %832 = vmatprep.mubr.bf16.mxu0 0
      %833 = vmatmul.mubr.bf16.gmra.mrb[0].mxu0 %v752
      %v834 = vpop.f32.mrb[0].mxu0
      %v835 = vadd.f32 0.0, %v834
      %v836 = vpop.f32.mrb[0].mxu0
      %v837 = vpop.f32.mrb[0].mxu0
      %v838 = vadd.f32 0.0, %v837
      %v839 = vpop.f32.mrb[0].mxu0
      %840 = vmatprep.mubr.bf16.mxu0 0
      %841 = vmatmul.mubr.bf16.gmra.mrb[0].mxu0 %v755
      %v842 = vpop.f32.mrb[0].mxu0
      %v843 = vadd.f32 0.0, %v842
      %v844 = vpop.f32.mrb[0].mxu0
      %v845 = vpop.f32.mrb[0].mxu0
      %v846 = vadd.f32 0.0, %v845
      %v847 = vpop.f32.mrb[0].mxu0
      %848 = vmatprep.mubr.bf16.mxu0 0
      %849 = vmatmul.mubr.bf16.gmra.mrb[0].mxu0 %v758
      %v850 = vpop.f32.mrb[0].mxu0
      %v851 = vadd.f32 0.0, %v850
      %v852 = vpop.f32.mrb[0].mxu0
      %v853 = vpop.f32.mrb[0].mxu0
      %v854 = vadd.f32 0.0, %v853
      %v855 = vpop.f32.mrb[0].mxu0
      %856 = vdwg.mxu0
      %v865 = vunpack.c.l.b16 %v695
      %v866 = vunpack.c.l.b16 %v696
      %v867 = vunpack.c.l.b16 %v697
      %v868 = vunpack.c.l.b16 %v698
      %v869 = vunpack.c.l.b16 %v699
      %v870 = vunpack.c.l.b16 %v700
      %v871 = vunpack.c.l.b16 %v701
      %v872 = vunpack.c.l.b16 %v702
      %v873 = vpack.c.b16 %v866, %v865
      %v874 = vpack.c.b16 %v868, %v867
      %v875 = vpack.c.b16 %v870, %v869
      %v876 = vpack.c.b16 %v872, %v871
      %v882 = vsel %vm735, %v679, 0
      %v885 = vsel %vm735, %v680, 0
      %v888 = vsel %vm735, %v681, 0
      %v891 = vsel %vm735, %v682, 0
      %v894 = vsel %vm735, %v683, 0
      %v897 = vsel %vm735, %v684, 0
      %v900 = vsel %vm735, %v685, 0
      %v903 = vsel %vm735, %v686, 0
      %905 = vmatprep.subr.bf16.mxu0 0
      %906 = vmatpush1.bf16.msra.mxu0 %v873
      %907 = vmatprep.subr.bf16.mxu0 0
      %908 = vmatpush1.bf16.msra.mxu0 %v874
      %909 = vmatprep.subr.bf16.mxu0 0
      %910 = vmatpush1.bf16.msra.mxu0 %v875
      %911 = vmatprep.subr.bf16.mxu0 0
      %912 = vmatpush1.bf16.msra.mxu0 %v876
      %913 = vmatprep.subr.bf16.mxu0 0
      %914 = vmatpush1.bf16.msra.mxu0 0
      %915 = vmatprep.subr.bf16.mxu0 0
      %916 = vmatpush1.bf16.msra.mxu0 0
      %917 = vmatprep.subr.bf16.mxu0 0
      %918 = vmatpush1.bf16.msra.mxu0 0
      %919 = vmatprep.subr.bf16.mxu0 0
      %920 = vmatpush1.bf16.msra.mxu0 0
      %921 = vmatprep.subr.bf16.mxu0 0
      %922 = vmatpush1.bf16.msra.mxu0 0
      %923 = vmatprep.subr.bf16.mxu0 0
      %924 = vmatpush1.bf16.msra.mxu0 0
      %925 = vmatprep.subr.bf16.mxu0 0
      %926 = vmatpush1.bf16.msra.mxu0 0
      %927 = vmatprep.subr.bf16.mxu0 0
      %928 = vmatpush1.bf16.msra.mxu0 0
      %929 = vmatprep.subr.bf16.mxu0 0
      %930 = vmatpush1.bf16.msra.mxu0 0
      %931 = vmatprep.subr.bf16.mxu0 0
      %932 = vmatpush1.bf16.msra.mxu0 0
      %933 = vmatprep.subr.bf16.mxu0 0
      %934 = vmatpush1.bf16.msra.mxu0 0
      %935 = vmatprep.subr.bf16.mxu0 0
      %936 = vmatpush1.bf16.msra.mxu0 0
      %937 = vmatprep.mubr.bf16.mxu0 0
      %938 = vmatmul.mubr.bf16.gmra.mrb[0].mxu0 %v882
      %v939 = vpop.f32.mrb[0].mxu0
      %v940 = vadd.f32 %v795, %v939
      %v941 = vpop.f32.mrb[0].mxu0
      %v942 = vpop.f32.mrb[0].mxu0
      %v943 = vadd.f32 %v798, %v942
      %v944 = vpop.f32.mrb[0].mxu0
      %945 = vmatprep.mubr.bf16.mxu0 0
      %946 = vmatmul.mubr.bf16.gmra.mrb[0].mxu0 %v885
      %v947 = vpop.f32.mrb[0].mxu0
      %v948 = vadd.f32 %v803, %v947
      %v949 = vpop.f32.mrb[0].mxu0
      %v950 = vpop.f32.mrb[0].mxu0
      %v951 = vadd.f32 %v806, %v950
      %v952 = vpop.f32.mrb[0].mxu0
      %953 = vmatprep.mubr.bf16.mxu0 0
      %954 = vmatmul.mubr.bf16.gmra.mrb[0].mxu0 %v888
      %v955 = vpop.f32.mrb[0].mxu0
      %v956 = vadd.f32 %v811, %v955
      %v957 = vpop.f32.mrb[0].mxu0
      %v958 = vpop.f32.mrb[0].mxu0
      %v959 = vadd.f32 %v814, %v958
      %v960 = vpop.f32.mrb[0].mxu0
      %961 = vmatprep.mubr.bf16.mxu0 0
      %962 = vmatmul.mubr.bf16.gmra.mrb[0].mxu0 %v891
      %v963 = vpop.f32.mrb[0].mxu0
      %v964 = vadd.f32 %v819, %v963
      %v965 = vpop.f32.mrb[0].mxu0
      %v966 = vpop.f32.mrb[0].mxu0
      %v967 = vadd.f32 %v822, %v966
      %v968 = vpop.f32.mrb[0].mxu0
      %969 = vmatprep.mubr.bf16.mxu0 0
      %970 = vmatmul.mubr.bf16.gmra.mrb[0].mxu0 %v894
      %v971 = vpop.f32.mrb[0].mxu0
      %v972 = vadd.f32 %v827, %v971
      %v973 = vpop.f32.mrb[0].mxu0
      %v974 = vpop.f32.mrb[0].mxu0
      %v975 = vadd.f32 %v830, %v974
      %v976 = vpop.f32.mrb[0].mxu0
      %977 = vmatprep.mubr.bf16.mxu0 0
      %978 = vmatmul.mubr.bf16.gmra.mrb[0].mxu0 %v897
      %v979 = vpop.f32.mrb[0].mxu0
      %v980 = vadd.f32 %v835, %v979
      %v981 = vpop.f32.mrb[0].mxu0
      %v982 = vpop.f32.mrb[0].mxu0
      %v983 = vadd.f32 %v838, %v982
      %v984 = vpop.f32.mrb[0].mxu0
      %985 = vmatprep.mubr.bf16.mxu0 0
      %986 = vmatmul.mubr.bf16.gmra.mrb[0].mxu0 %v900
      %v987 = vpop.f32.mrb[0].mxu0
      %v988 = vadd.f32 %v843, %v987
      %v989 = vpop.f32.mrb[0].mxu0
      %v990 = vpop.f32.mrb[0].mxu0
      %v991 = vadd.f32 %v846, %v990
      %v992 = vpop.f32.mrb[0].mxu0
      %993 = vmatprep.mubr.bf16.mxu0 0
      %994 = vmatmul.mubr.bf16.gmra.mrb[0].mxu0 %v903
      %v995 = vpop.f32.mrb[0].mxu0
      %v996 = vadd.f32 %v851, %v995
      %v997 = vpop.f32.mrb[0].mxu0
      %v998 = vpop.f32.mrb[0].mxu0
      %v999 = vadd.f32 %v854, %v998
      %v1000 = vpop.f32.mrb[0].mxu0
      %1001 = vdwg.mxu0
      %v1002 = vld [vmem:[%s5] sm:$0x1]
      %v1004 = vlaneseq
      %v1005 = vshrl.u32 %v1004, 7
      %v1006 = vsub.s32 0, %v1005
      %v1007 = vrot.slane %v1002, %v1006
      %v1009 = vadd.f32 %v940, %v1007
      %v1010 = vadd.f32 %v943, %v1007
      %v1011 = vadd.f32 %v948, %v1007
      %v1012 = vadd.f32 %v951, %v1007
      %v1013 = vadd.f32 %v956, %v1007
      %v1014 = vadd.f32 %v959, %v1007
      %v1015 = vadd.f32 %v964, %v1007
      %v1016 = vadd.f32 %v967, %v1007
      %v1017 = vadd.f32 %v972, %v1007
      %v1018 = vadd.f32 %v975, %v1007
      %v1019 = vadd.f32 %v980, %v1007
      %v1020 = vadd.f32 %v983, %v1007
      %v1021 = vadd.f32 %v988, %v1007
      %v1022 = vadd.f32 %v991, %v1007
      %v1023 = vadd.f32 %v996, %v1007
      %v1024 = vadd.f32 %v999, %v1007
      %v1025 = vmul.f32 %v1009, 0.5
      %v1026 = vmul.f32 %v1010, 0.5
      %v1027 = vmul.f32 %v1011, 0.5
      %v1028 = vmul.f32 %v1012, 0.5
      %v1029 = vmul.f32 %v1013, 0.5
      %v1030 = vmul.f32 %v1014, 0.5
      %v1031 = vmul.f32 %v1015, 0.5
      %v1032 = vmul.f32 %v1016, 0.5
      %v1033 = vmul.f32 %v1017, 0.5
      %v1034 = vmul.f32 %v1018, 0.5
      %v1035 = vmul.f32 %v1019, 0.5
      %v1036 = vmul.f32 %v1020, 0.5
      %v1037 = vmul.f32 %v1021, 0.5
      %v1038 = vmul.f32 %v1022, 0.5
      %v1039 = vmul.f32 %v1023, 0.5
      %v1040 = vmul.f32 %v1024, 0.5
      %v1041 = vmul.f32 %v1009, 0.044715
      %v1042 = vmul.f32 %v1010, 0.044715
      %v1043 = vmul.f32 %v1011, 0.044715
      %v1044 = vmul.f32 %v1012, 0.044715
      %v1045 = vmul.f32 %v1013, 0.044715
      %v1046 = vmul.f32 %v1014, 0.044715
      %v1047 = vmul.f32 %v1015, 0.044715
      %v1048 = vmul.f32 %v1016, 0.044715
      %v1049 = vmul.f32 %v1017, 0.044715
      %v1050 = vmul.f32 %v1018, 0.044715
      %v1051 = vmul.f32 %v1019, 0.044715
      %v1052 = vmul.f32 %v1020, 0.044715
      %v1053 = vmul.f32 %v1021, 0.044715
      %v1054 = vmul.f32 %v1022, 0.044715
      %v1055 = vmul.f32 %v1023, 0.044715
      %v1056 = vmul.f32 %v1024, 0.044715
      %v1057 = vmul.f32 %v1041, %v1009
      %v1058 = vmul.f32 %v1042, %v1010
      %v1059 = vmul.f32 %v1043, %v1011
      %v1060 = vmul.f32 %v1044, %v1012
      %v1061 = vmul.f32 %v1045, %v1013
      %v1062 = vmul.f32 %v1046, %v1014
      %v1063 = vmul.f32 %v1047, %v1015
      %v1064 = vmul.f32 %v1048, %v1016
      %v1065 = vmul.f32 %v1049, %v1017
      %v1066 = vmul.f32 %v1050, %v1018
      %v1067 = vmul.f32 %v1051, %v1019
      %v1068 = vmul.f32 %v1052, %v1020
      %v1069 = vmul.f32 %v1053, %v1021
      %v1070 = vmul.f32 %v1054, %v1022
      %v1071 = vmul.f32 %v1055, %v1023
      %v1072 = vmul.f32 %v1056, %v1024
      %v1073 = vmul.f32 %v1057, %v1009
      %v1074 = vmul.f32 %v1058, %v1010
      %v1075 = vmul.f32 %v1059, %v1011
      %v1076 = vmul.f32 %v1060, %v1012
      %v1077 = vmul.f32 %v1061, %v1013
      %v1078 = vmul.f32 %v1062, %v1014
      %v1079 = vmul.f32 %v1063, %v1015
      %v1080 = vmul.f32 %v1064, %v1016
      %v1081 = vmul.f32 %v1065, %v1017
      %v1082 = vmul.f32 %v1066, %v1018
      %v1083 = vmul.f32 %v1067, %v1019
      %v1084 = vmul.f32 %v1068, %v1020
      %v1085 = vmul.f32 %v1069, %v1021
      %v1086 = vmul.f32 %v1070, %v1022
      %v1087 = vmul.f32 %v1071, %v1023
      %v1088 = vmul.f32 %v1072, %v1024
      %v1089 = vadd.f32 %v1009, %v1073
      %v1090 = vadd.f32 %v1010, %v1074
      %v1091 = vadd.f32 %v1011, %v1075
      %v1092 = vadd.f32 %v1012, %v1076
      %v1093 = vadd.f32 %v1013, %v1077
      %v1094 = vadd.f32 %v1014, %v1078
      %v1095 = vadd.f32 %v1015, %v1079
      %v1096 = vadd.f32 %v1016, %v1080
      %v1097 = vadd.f32 %v1017, %v1081
      %v1098 = vadd.f32 %v1018, %v1082
      %v1099 = vadd.f32 %v1019, %v1083
      %v1100 = vadd.f32 %v1020, %v1084
      %v1101 = vadd.f32 %v1021, %v1085
      %v1102 = vadd.f32 %v1022, %v1086
      %v1103 = vadd.f32 %v1023, %v1087
      %v1104 = vadd.f32 %v1024, %v1088
      %v1105 = vmul.f32 %v1089, 0.7978846
      %v1106 = vmul.f32 %v1090, 0.7978846
      %v1107 = vmul.f32 %v1091, 0.7978846
      %v1108 = vmul.f32 %v1092, 0.7978846
      %v1109 = vmul.f32 %v1093, 0.7978846
      %v1110 = vmul.f32 %v1094, 0.7978846
      %v1111 = vmul.f32 %v1095, 0.7978846
      %v1112 = vmul.f32 %v1096, 0.7978846
      %v1113 = vmul.f32 %v1097, 0.7978846
      %v1114 = vmul.f32 %v1098, 0.7978846
      %v1115 = vmul.f32 %v1099, 0.7978846
      %v1116 = vmul.f32 %v1100, 0.7978846
      %v1117 = vmul.f32 %v1101, 0.7978846
      %v1118 = vmul.f32 %v1102, 0.7978846
      %v1119 = vmul.f32 %v1103, 0.7978846
      %v1120 = vmul.f32 %v1104, 0.7978846
      %v1121 = vtanh.pop %v1105
      %v1122 = vtanh.pop %v1106
      %v1123 = vtanh.pop %v1107
      %v1124 = vtanh.pop %v1108
      %v1125 = vtanh.pop %v1109
      %v1126 = vtanh.pop %v1110
      %v1127 = vtanh.pop %v1111
      %v1128 = vtanh.pop %v1112
      %v1129 = vtanh.pop %v1113
      %v1130 = vtanh.pop %v1114
      %v1131 = vtanh.pop %v1115
      %v1132 = vtanh.pop %v1116
      %v1133 = vtanh.pop %v1117
      %v1134 = vtanh.pop %v1118
      %v1135 = vtanh.pop %v1119
      %v1136 = vtanh.pop %v1120
      %v1137 = vadd.f32 %v1121, 1.0
      %v1138 = vadd.f32 %v1122, 1.0
      %v1139 = vadd.f32 %v1123, 1.0
      %v1140 = vadd.f32 %v1124, 1.0
      %v1141 = vadd.f32 %v1125, 1.0
      %v1142 = vadd.f32 %v1126, 1.0
      %v1143 = vadd.f32 %v1127, 1.0
      %v1144 = vadd.f32 %v1128, 1.0
      %v1145 = vadd.f32 %v1129, 1.0
      %v1146 = vadd.f32 %v1130, 1.0
      %v1147 = vadd.f32 %v1131, 1.0
      %v1148 = vadd.f32 %v1132, 1.0
      %v1149 = vadd.f32 %v1133, 1.0
      %v1150 = vadd.f32 %v1134, 1.0
      %v1151 = vadd.f32 %v1135, 1.0
      %v1152 = vadd.f32 %v1136, 1.0
      %v1153 = vmul.f32 %v1025, %v1137
      %v1154 = vmul.f32 %v1026, %v1138
      %v1155 = vmul.f32 %v1027, %v1139
      %v1156 = vmul.f32 %v1028, %v1140
      %v1157 = vmul.f32 %v1029, %v1141
      %v1158 = vmul.f32 %v1030, %v1142
      %v1159 = vmul.f32 %v1031, %v1143
      %v1160 = vmul.f32 %v1032, %v1144
      %v1161 = vmul.f32 %v1033, %v1145
      %v1162 = vmul.f32 %v1034, %v1146
      %v1163 = vmul.f32 %v1035, %v1147
      %v1164 = vmul.f32 %v1036, %v1148
      %v1165 = vmul.f32 %v1037, %v1149
      %v1166 = vmul.f32 %v1038, %v1150
      %v1167 = vmul.f32 %v1039, %v1151
      %v1168 = vmul.f32 %v1040, %v1152
      %v1169 = vsel %vm735, %v1153, 0.0
      %1170 = vadd.xlane.f32.xlu0 %v1169
      %v1171 = vpop.xlane.xlu0 %1170
      %v1172 = vsel %vm735, %v1154, 0.0
      %1173 = vadd.xlane.f32.xlu0 %v1172
      %v1174 = vpop.xlane.xlu0 %1173
      %v1175 = vsel %vm735, %v1155, 0.0
      %1176 = vadd.xlane.f32.xlu0 %v1175
      %v1177 = vpop.xlane.xlu0 %1176
      %v1178 = vsel %vm735, %v1156, 0.0
      %1179 = vadd.xlane.f32.xlu0 %v1178
      %v1180 = vpop.xlane.xlu0 %1179
      %v1181 = vsel %vm735, %v1157, 0.0
      %1182 = vadd.xlane.f32.xlu0 %v1181
      %v1183 = vpop.xlane.xlu0 %1182
      %v1184 = vsel %vm735, %v1158, 0.0
      %1185 = vadd.xlane.f32.xlu0 %v1184
      %v1186 = vpop.xlane.xlu0 %1185
      %v1187 = vsel %vm735, %v1159, 0.0
      %1188 = vadd.xlane.f32.xlu0 %v1187
      %v1189 = vpop.xlane.xlu0 %1188
      %v1190 = vsel %vm735, %v1160, 0.0
      %1191 = vadd.xlane.f32.xlu0 %v1190
      %v1192 = vpop.xlane.xlu0 %1191
      %v1193 = vsel %vm735, %v1161, 0.0
      %1194 = vadd.xlane.f32.xlu0 %v1193
      %v1195 = vpop.xlane.xlu0 %1194
      %v1196 = vsel %vm735, %v1162, 0.0
      %1197 = vadd.xlane.f32.xlu0 %v1196
      %v1198 = vpop.xlane.xlu0 %1197
      %v1199 = vsel %vm735, %v1163, 0.0
      %1200 = vadd.xlane.f32.xlu0 %v1199
      %v1201 = vpop.xlane.xlu0 %1200
      %v1202 = vsel %vm735, %v1164, 0.0
      %1203 = vadd.xlane.f32.xlu0 %v1202
      %v1204 = vpop.xlane.xlu0 %1203
      %v1205 = vsel %vm735, %v1165, 0.0
      %1206 = vadd.xlane.f32.xlu0 %v1205
      %v1207 = vpop.xlane.xlu0 %1206
      %v1208 = vsel %vm735, %v1166, 0.0
      %1209 = vadd.xlane.f32.xlu0 %v1208
      %v1210 = vpop.xlane.xlu0 %1209
      %v1211 = vsel %vm735, %v1167, 0.0
      %1212 = vadd.xlane.f32.xlu0 %v1211
      %v1213 = vpop.xlane.xlu0 %1212
      %v1214 = vsel %vm735, %v1168, 0.0
      %1215 = vadd.xlane.f32.xlu0 %v1214
      %v1216 = vpop.xlane.xlu0 %1215
      %v1217 = vrcp.pop 64.0
      %v1218 = vmul.f32 %v1171, %v1217
      %v1219 = vmul.f32 %v1174, %v1217
      %v1220 = vmul.f32 %v1177, %v1217
      %v1221 = vmul.f32 %v1180, %v1217
      %v1222 = vmul.f32 %v1183, %v1217
      %v1223 = vmul.f32 %v1186, %v1217
      %v1224 = vmul.f32 %v1189, %v1217
      %v1225 = vmul.f32 %v1192, %v1217
      %v1226 = vmul.f32 %v1195, %v1217
      %v1227 = vmul.f32 %v1198, %v1217
      %v1228 = vmul.f32 %v1201, %v1217
      %v1229 = vmul.f32 %v1204, %v1217
      %v1230 = vmul.f32 %v1207, %v1217
      %v1231 = vmul.f32 %v1210, %v1217
      %v1232 = vmul.f32 %v1213, %v1217
      %v1233 = vmul.f32 %v1216, %v1217
      %v1234 = vsub.f32 %v1153, %v1218
      %v1235 = vsub.f32 %v1154, %v1219
      %v1236 = vsub.f32 %v1155, %v1220
      %v1237 = vsub.f32 %v1156, %v1221
      %v1238 = vsub.f32 %v1157, %v1222
      %v1239 = vsub.f32 %v1158, %v1223
      %v1240 = vsub.f32 %v1159, %v1224
      %v1241 = vsub.f32 %v1160, %v1225
      %v1242 = vsub.f32 %v1161, %v1226
      %v1243 = vsub.f32 %v1162, %v1227
      %v1244 = vsub.f32 %v1163, %v1228
      %v1245 = vsub.f32 %v1164, %v1229
      %v1246 = vsub.f32 %v1165, %v1230
      %v1247 = vsub.f32 %v1166, %v1231
      %v1248 = vsub.f32 %v1167, %v1232
      %v1249 = vsub.f32 %v1168, %v1233
      %v1250 = vmul.f32 %v1234, %v1234
      %v1251 = vmul.f32 %v1235, %v1235
      %v1252 = vmul.f32 %v1236, %v1236
      %v1253 = vmul.f32 %v1237, %v1237
      %v1254 = vmul.f32 %v1238, %v1238
      %v1255 = vmul.f32 %v1239, %v1239
      %v1256 = vmul.f32 %v1240, %v1240
      %v1257 = vmul.f32 %v1241, %v1241
      %v1258 = vmul.f32 %v1242, %v1242
      %v1259 = vmul.f32 %v1243, %v1243
      %v1260 = vmul.f32 %v1244, %v1244
      %v1261 = vmul.f32 %v1245, %v1245
      %v1262 = vmul.f32 %v1246, %v1246
      %v1263 = vmul.f32 %v1247, %v1247
      %v1264 = vmul.f32 %v1248, %v1248
      %v1265 = vmul.f32 %v1249, %v1249
      %v1266 = vsel %vm735, %v1250, 0.0
      %1267 = vadd.xlane.f32.xlu0 %v1266
      %v1268 = vpop.xlane.xlu0 %1267
      %v1269 = vsel %vm735, %v1251, 0.0
      %1270 = vadd.xlane.f32.xlu0 %v1269
      %v1271 = vpop.xlane.xlu0 %1270
      %v1272 = vsel %vm735, %v1252, 0.0
      %1273 = vadd.xlane.f32.xlu0 %v1272
      %v1274 = vpop.xlane.xlu0 %1273
      %v1275 = vsel %vm735, %v1253, 0.0
      %1276 = vadd.xlane.f32.xlu0 %v1275
      %v1277 = vpop.xlane.xlu0 %1276
      %v1278 = vsel %vm735, %v1254, 0.0
      %1279 = vadd.xlane.f32.xlu0 %v1278
      %v1280 = vpop.xlane.xlu0 %1279
      %v1281 = vsel %vm735, %v1255, 0.0
      %1282 = vadd.xlane.f32.xlu0 %v1281
      %v1283 = vpop.xlane.xlu0 %1282
      %v1284 = vsel %vm735, %v1256, 0.0
      %1285 = vadd.xlane.f32.xlu0 %v1284
      %v1286 = vpop.xlane.xlu0 %1285
      %v1287 = vsel %vm735, %v1257, 0.0
      %1288 = vadd.xlane.f32.xlu0 %v1287
      %v1289 = vpop.xlane.xlu0 %1288
      %v1290 = vsel %vm735, %v1258, 0.0
      %1291 = vadd.xlane.f32.xlu0 %v1290
      %v1292 = vpop.xlane.xlu0 %1291
      %v1293 = vsel %vm735, %v1259, 0.0
      %1294 = vadd.xlane.f32.xlu0 %v1293
      %v1295 = vpop.xlane.xlu0 %1294
      %v1296 = vsel %vm735, %v1260, 0.0
      %1297 = vadd.xlane.f32.xlu0 %v1296
      %v1298 = vpop.xlane.xlu0 %1297
      %v1299 = vsel %vm735, %v1261, 0.0
      %1300 = vadd.xlane.f32.xlu0 %v1299
      %v1301 = vpop.xlane.xlu0 %1300
      %v1302 = vsel %vm735, %v1262, 0.0
      %1303 = vadd.xlane.f32.xlu0 %v1302
      %v1304 = vpop.xlane.xlu0 %1303
      %v1305 = vsel %vm735, %v1263, 0.0
      %1306 = vadd.xlane.f32.xlu0 %v1305
      %v1307 = vpop.xlane.xlu0 %1306
      %v1308 = vsel %vm735, %v1264, 0.0
      %1309 = vadd.xlane.f32.xlu0 %v1308
      %v1310 = vpop.xlane.xlu0 %1309
      %v1311 = vsel %vm735, %v1265, 0.0
      %1312 = vadd.xlane.f32.xlu0 %v1311
      %v1313 = vpop.xlane.xlu0 %1312
      %v1314 = vmul.f32 %v1268, %v1217
      %v1315 = vmul.f32 %v1271, %v1217
      %v1316 = vmul.f32 %v1274, %v1217
      %v1317 = vmul.f32 %v1277, %v1217
      %v1318 = vmul.f32 %v1280, %v1217
      %v1319 = vmul.f32 %v1283, %v1217
      %v1320 = vmul.f32 %v1286, %v1217
      %v1321 = vmul.f32 %v1289, %v1217
      %v1322 = vmul.f32 %v1292, %v1217
      %v1323 = vmul.f32 %v1295, %v1217
      %v1324 = vmul.f32 %v1298, %v1217
      %v1325 = vmul.f32 %v1301, %v1217
      %v1326 = vmul.f32 %v1304, %v1217
      %v1327 = vmul.f32 %v1307, %v1217
      %v1328 = vmul.f32 %v1310, %v1217
      %v1329 = vmul.f32 %v1313, %v1217
      %v1330 = vadd.f32 %v1314, 1e-05
      %v1331 = vadd.f32 %v1315, 1e-05
      %v1332 = vadd.f32 %v1316, 1e-05
      %v1333 = vadd.f32 %v1317, 1e-05
      %v1334 = vadd.f32 %v1318, 1e-05
      %v1335 = vadd.f32 %v1319, 1e-05
      %v1336 = vadd.f32 %v1320, 1e-05
      %v1337 = vadd.f32 %v1321, 1e-05
      %v1338 = vadd.f32 %v1322, 1e-05
      %v1339 = vadd.f32 %v1323, 1e-05
      %v1340 = vadd.f32 %v1324, 1e-05
      %v1341 = vadd.f32 %v1325, 1e-05
      %v1342 = vadd.f32 %v1326, 1e-05
      %v1343 = vadd.f32 %v1327, 1e-05
      %v1344 = vadd.f32 %v1328, 1e-05
      %v1345 = vadd.f32 %v1329, 1e-05
      %v1346 = vrsqrt.pop %v1330
      %v1347 = vrsqrt.pop %v1331
      %v1348 = vrsqrt.pop %v1332
      %v1349 = vrsqrt.pop %v1333
      %v1350 = vrsqrt.pop %v1334
      %v1351 = vrsqrt.pop %v1335
      %v1352 = vrsqrt.pop %v1336
      %v1353 = vrsqrt.pop %v1337
      %v1354 = vrsqrt.pop %v1338
      %v1355 = vrsqrt.pop %v1339
      %v1356 = vrsqrt.pop %v1340
      %v1357 = vrsqrt.pop %v1341
      %v1358 = vrsqrt.pop %v1342
      %v1359 = vrsqrt.pop %v1343
      %v1360 = vrsqrt.pop %v1344
      %v1361 = vrsqrt.pop %v1345
      %v1362 = vmul.f32 %v1234, %v1346
      %v1363 = vmul.f32 %v1235, %v1347
      %v1364 = vmul.f32 %v1236, %v1348
      %v1365 = vmul.f32 %v1237, %v1349
      %v1366 = vmul.f32 %v1238, %v1350
      %v1367 = vmul.f32 %v1239, %v1351
      %v1368 = vmul.f32 %v1240, %v1352
      %v1369 = vmul.f32 %v1241, %v1353
      %v1370 = vmul.f32 %v1242, %v1354
      %v1371 = vmul.f32 %v1243, %v1355
      %v1372 = vmul.f32 %v1244, %v1356
      %v1373 = vmul.f32 %v1245, %v1357
      %v1374 = vmul.f32 %v1246, %v1358
      %v1375 = vmul.f32 %v1247, %v1359
      %v1376 = vmul.f32 %v1248, %v1360
      %v1377 = vmul.f32 %v1249, %v1361
      %v1378 = vpack.c.bf16 %v1363, %v1362
      %v1379 = vpack.c.bf16 %v1365, %v1364
      %v1380 = vpack.c.bf16 %v1367, %v1366
      %v1381 = vpack.c.bf16 %v1369, %v1368
      %v1382 = vpack.c.bf16 %v1371, %v1370
      %v1383 = vpack.c.bf16 %v1373, %v1372
      %v1384 = vpack.c.bf16 %v1375, %v1374
      %v1385 = vpack.c.bf16 %v1377, %v1376
      %v1386 = vld [vmem:[%s6] sm:$0xf]
      %v1387 = vld [vmem:[%s6 + $0x4] sm:$0xf]
      %v1388 = vld [vmem:[%s6 + $0x8] sm:$0xf]
      %v1389 = vld [vmem:[%s6 + $0xc] sm:$0xf]
      %v1390 = vld [vmem:[%s6 + $0x10] sm:$0xf]
      %v1391 = vld [vmem:[%s6 + $0x14] sm:$0xf]
      %v1392 = vld [vmem:[%s6 + $0x18] sm:$0xf]
      %v1393 = vld [vmem:[%s6 + $0x1c] sm:$0xf]
      %v1394 = vld [vmem:[%s7] sm:$0x1]
      %v1396 = vlaneseq
      %v1397 = vshrl.u32 %v1396, 7
      %v1398 = vsub.s32 0, %v1397
      %v1399 = vrot.slane %v1394, %v1398
      %v1409 = vunpack.c.l.b16 %v1386
      %v1410 = vunpack.c.l.b16 %v1387
      %v1411 = vunpack.c.l.b16 %v1388
      %v1412 = vunpack.c.l.b16 %v1389
      %v1413 = vunpack.c.l.b16 %v1390
      %v1414 = vunpack.c.l.b16 %v1391
      %v1415 = vunpack.c.l.b16 %v1392
      %v1416 = vunpack.c.l.b16 %v1393
      %v1417 = vpack.c.b16 %v1410, %v1409
      %v1418 = vpack.c.b16 %v1412, %v1411
      %v1419 = vpack.c.b16 %v1414, %v1413
      %v1420 = vpack.c.b16 %v1416, %v1415
      %v1426 = vsel %vm735, %v1378, 0
      %v1429 = vsel %vm735, %v1379, 0
      %v1432 = vsel %vm735, %v1380, 0
      %v1435 = vsel %vm735, %v1381, 0
      %v1438 = vsel %vm735, %v1382, 0
      %v1441 = vsel %vm735, %v1383, 0
      %v1444 = vsel %vm735, %v1384, 0
      %v1447 = vsel %vm735, %v1385, 0
      %1449 = vmatprep.subr.bf16.mxu0 0
      %1450 = vmatpush1.bf16.msra.mxu0 %v1417
      %1451 = vmatprep.subr.bf16.mxu0 0
      %1452 = vmatpush1.bf16.msra.mxu0 %v1418
      %1453 = vmatprep.subr.bf16.mxu0 0
      %1454 = vmatpush1.bf16.msra.mxu0 %v1419
      %1455 = vmatprep.subr.bf16.mxu0 0
      %1456 = vmatpush1.bf16.msra.mxu0 %v1420
      %1457 = vmatprep.subr.bf16.mxu0 0
      %1458 = vmatpush1.bf16.msra.mxu0 0
      %1459 = vmatprep.subr.bf16.mxu0 0
      %1460 = vmatpush1.bf16.msra.mxu0 0
      %1461 = vmatprep.subr.bf16.mxu0 0
      %1462 = vmatpush1.bf16.msra.mxu0 0
      %1463 = vmatprep.subr.bf16.mxu0 0
      %1464 = vmatpush1.bf16.msra.mxu0 0
      %1465 = vmatprep.subr.bf16.mxu0 0
      %1466 = vmatpush1.bf16.msra.mxu0 0
      %1467 = vmatprep.subr.bf16.mxu0 0
      %1468 = vmatpush1.bf16.msra.mxu0 0
      %1469 = vmatprep.subr.bf16.mxu0 0
      %1470 = vmatpush1.bf16.msra.mxu0 0
      %1471 = vmatprep.subr.bf16.mxu0 0
      %1472 = vmatpush1.bf16.msra.mxu0 0
      %1473 = vmatprep.subr.bf16.mxu0 0
      %1474 = vmatpush1.bf16.msra.mxu0 0
      %1475 = vmatprep.subr.bf16.mxu0 0
      %1476 = vmatpush1.bf16.msra.mxu0 0
      %1477 = vmatprep.subr.bf16.mxu0 0
      %1478 = vmatpush1.bf16.msra.mxu0 0
      %1479 = vmatprep.subr.bf16.mxu0 0
      %1480 = vmatpush1.bf16.msra.mxu0 0
      %1481 = vmatprep.mubr.bf16.mxu0 0
      %1482 = vmatmul.mubr.bf16.gmra.mrb[0].mxu0 %v1426
      %v1483 = vpop.f32.mrb[0].mxu0
      %v1484 = vadd.f32 %v1399, %v1483
      %v1485 = vpop.f32.mrb[0].mxu0
      %v1486 = vpop.f32.mrb[0].mxu0
      %v1487 = vadd.f32 %v1399, %v1486
      %v1488 = vpop.f32.mrb[0].mxu0
      %1489 = vmatprep.mubr.bf16.mxu0 0
      %1490 = vmatmul.mubr.bf16.gmra.mrb[0].mxu0 %v1429
      %v1491 = vpop.f32.mrb[0].mxu0
      %v1492 = vadd.f32 %v1399, %v1491
      %v1493 = vpop.f32.mrb[0].mxu0
      %v1494 = vpop.f32.mrb[0].mxu0
      %v1495 = vadd.f32 %v1399, %v1494
      %v1496 = vpop.f32.mrb[0].mxu0
      %1497 = vmatprep.mubr.bf16.mxu0 0
      %1498 = vmatmul.mubr.bf16.gmra.mrb[0].mxu0 %v1432
      %v1499 = vpop.f32.mrb[0].mxu0
      %v1500 = vadd.f32 %v1399, %v1499
      %v1501 = vpop.f32.mrb[0].mxu0
      %v1502 = vpop.f32.mrb[0].mxu0
      %v1503 = vadd.f32 %v1399, %v1502
      %v1504 = vpop.f32.mrb[0].mxu0
      %1505 = vmatprep.mubr.bf16.mxu0 0
      %1506 = vmatmul.mubr.bf16.gmra.mrb[0].mxu0 %v1435
      %v1507 = vpop.f32.mrb[0].mxu0
      %v1508 = vadd.f32 %v1399, %v1507
      %v1509 = vpop.f32.mrb[0].mxu0
      %v1510 = vpop.f32.mrb[0].mxu0
      %v1511 = vadd.f32 %v1399, %v1510
      %v1512 = vpop.f32.mrb[0].mxu0
      %1513 = vmatprep.mubr.bf16.mxu0 0
      %1514 = vmatmul.mubr.bf16.gmra.mrb[0].mxu0 %v1438
      %v1515 = vpop.f32.mrb[0].mxu0
      %v1516 = vadd.f32 %v1399, %v1515
      %v1517 = vpop.f32.mrb[0].mxu0
      %v1518 = vpop.f32.mrb[0].mxu0
      %v1519 = vadd.f32 %v1399, %v1518
      %v1520 = vpop.f32.mrb[0].mxu0
      %1521 = vmatprep.mubr.bf16.mxu0 0
      %1522 = vmatmul.mubr.bf16.gmra.mrb[0].mxu0 %v1441
      %v1523 = vpop.f32.mrb[0].mxu0
      %v1524 = vadd.f32 %v1399, %v1523
      %v1525 = vpop.f32.mrb[0].mxu0
      %v1526 = vpop.f32.mrb[0].mxu0
      %v1527 = vadd.f32 %v1399, %v1526
      %v1528 = vpop.f32.mrb[0].mxu0
      %1529 = vmatprep.mubr.bf16.mxu0 0
      %1530 = vmatmul.mubr.bf16.gmra.mrb[0].mxu0 %v1444
      %v1531 = vpop.f32.mrb[0].mxu0
      %v1532 = vadd.f32 %v1399, %v1531
      %v1533 = vpop.f32.mrb[0].mxu0
      %v1534 = vpop.f32.mrb[0].mxu0
      %v1535 = vadd.f32 %v1399, %v1534
      %v1536 = vpop.f32.mrb[0].mxu0
      %1537 = vmatprep.mubr.bf16.mxu0 0
      %1538 = vmatmul.mubr.bf16.gmra.mrb[0].mxu0 %v1447
      %v1539 = vpop.f32.mrb[0].mxu0
      %v1540 = vadd.f32 %v1399, %v1539
      %v1541 = vpop.f32.mrb[0].mxu0
      %v1542 = vpop.f32.mrb[0].mxu0
      %v1543 = vadd.f32 %v1399, %v1542
      %v1544 = vpop.f32.mrb[0].mxu0
      %1545 = vdwg.mxu0
      %1546 = vst [vmem:[%s305] sm:$0xff] %v1484
      %1547 = vst [vmem:[%s305 + $0x8] sm:$0xff] %v1487
      %1548 = vst [vmem:[%s305 + $0x10] sm:$0xff] %v1492
      %1549 = vst [vmem:[%s305 + $0x18] sm:$0xff] %v1495
      %1550 = vst [vmem:[%s305 + $0x20] sm:$0xff] %v1500
      %1551 = vst [vmem:[%s305 + $0x28] sm:$0xff] %v1503
      %1552 = vst [vmem:[%s305 + $0x30] sm:$0xff] %v1508
      %1553 = vst [vmem:[%s305 + $0x38] sm:$0xff] %v1511
      %1554 = vst [vmem:[%s305 + $0x40] sm:$0xff] %v1516
      %1555 = vst [vmem:[%s305 + $0x48] sm:$0xff] %v1519
      %1556 = vst [vmem:[%s305 + $0x50] sm:$0xff] %v1524
      %1557 = vst [vmem:[%s305 + $0x58] sm:$0xff] %v1527
      %1558 = vst [vmem:[%s305 + $0x60] sm:$0xff] %v1532
      %1559 = vst [vmem:[%s305 + $0x68] sm:$0xff] %v1535
      %1560 = vst [vmem:[%s305 + $0x70] sm:$0xff] %v1540
      %1561 = vst [vmem:[%s305 + $0x78] sm:$0x3f] %v1543
      %p1562 = scmp.lt.s32.totalorder %s19, 1
      %s1563 = scalar_select %p1562, %s19, 1
      %s1564 = smul.addr %s1563, 16
      %s1565 = smul.addr %s1564, 8
      %s1566 = scalar_lea.vmem %s8, %s1565
      // Predicated region
      $region53: #{w2v2_ta_forward.1} parent=51 // pred_check
        %p1567 = pneg %p210
      $region54: #{w2v2_ta_forward.1} parent=51 // pred_check_branch
        %1569 = sbr.rel (%p1567) target = $region56
      $region55: #{w2v2_ta_forward.1} parent=51 // pred_region
        _
      $region56: #{w2v2_ta_forward.1} parent=51 // pred_fallthru
        _
    $region52: #{w2v2_ta_forward.1} parent=5 // pred_fallthru
      _
    %p1570 = scmp.le.s32.totalorder 2, %s14
    // Predicated region
    $region57: #{w2v2_ta_forward.1} parent=5 // pred_check
      %p1571 = pneg %p1570
    $region58: #{w2v2_ta_forward.1} parent=5 // pred_check_branch
      %1573 = sbr.rel (%p1571) target = $region60
    $region59: #{w2v2_ta_forward.1} parent=5 // pred_region
      %s1574 = ssub.s32 %s14, 2
      // Predicated region
      $region61: #{w2v2_ta_forward.1} parent=59 // pred_check
        %p1575 = pneg %p216
      $region62: #{w2v2_ta_forward.1} parent=59 // pred_check_branch
        %1577 = sbr.rel (%p1575) target = $region64
      $region63: #{w2v2_ta_forward.1} parent=59 // pred_region
        %p1578 = scmp.lt.s32.totalorder %s20, 1
        %s1579 = scalar_select %p1578, %s20, 1
        %s1580 = smul.addr %s1579, 16
        %s1581 = smul.addr %s1580, 8
        %s1582 = scalar_lea.vmem %s8, %s1581
      $region64: #{w2v2_ta_forward.1} parent=59 // pred_fallthru
        _
    $region60: #{w2v2_ta_forward.1} parent=5 // pred_fallthru
      _
  $region6: #{w2v2_ta_forward.1} parent=0 // loop_footer
    %s18 = sadd.s32 1, %s14
  $region7: #{w2v2_ta_forward.1} parent=0 // loop_footer_branch
    %13 = sbr.rel target = $region3
  $region8: #{w2v2_ta_forward.1} parent=0 // loop_exit
    _

</llo_original>
